<compile_context>
chip_gen: v5e
topology: v5e:2x2
jax: 0.10.0
libtpu: 0.0.40
codegen_flags: <defaults>
</compile_context>

<pallas_src>
import functools

import jax
import jax.numpy as jnp
from jax import lax
from jax.experimental import pallas as pl
from jax.experimental.pallas import tpu as pltpu

STREAM_OUT = 128  # each stream branch outputs 128 channels -> cat gives 256 features


def _choose_hw_tile(hw_padded, c, cap=4096, max_block_bytes=1 << 20):
    """Largest multiple-of-128 divisor of hw_padded that fits the lane cap and a
    per-block byte budget (keeps double-buffered x blocks + (hw,256) f32 intermediates
    comfortably inside v7x's 32 MiB scoped-VMEM default)."""
    c_pad = max(8, -(-c // 8) * 8)
    by_bytes = (max_block_bytes // (c_pad * 4)) // 128 * 128
    cap = max(128, min(cap, by_bytes))
    t = min(cap, hw_padded)
    t = (t // 128) * 128
    while t >= 128:
        if hw_padded % t == 0:
            return t
        t -= 128
    return 128


def _stream_gap_kernel(x_ref, w_ref, b_ref, c_ref, o_ref, *,
                       inv_hw, hw_valid, hw_tile, needs_mask):
    # x_ref: (1, C, hw_tile)  one batch slab, full C, HW on lanes
    # w_ref: (C, 256) block-diagonal stream weight ([ref-half -> :128, test-half -> 128:])
    # b_ref: (1, 256) = [b, b];  c_ref: (1, 256) = [c, c] with c = 255*colsum(W)+b
    # o_ref: (1, 4, 128) f32 GAP accumulator [ref, ref_inv, test, test_inv], resident
    #        across the hw grid axis.
    hw_i = pl.program_id(1)
    n_hw = pl.num_programs(1)

    x = x_ref[0]                                              # (C, hw_tile)
    # single MXU pass covering both halves: result (hw_tile, 256), lane-dense
    y = lax.dot_general(x, w_ref[...], (((0,), (0,)), ((), ())),
                        preferred_element_type=jnp.float32)
    yn = jnp.maximum(y + b_ref[...], 0.0)                     # normal branches
    yi = jnp.maximum(c_ref[...] - y, 0.0)                     # inverse branches (255-x fold)

    if needs_mask:  # only when HW was padded up to a multiple of 128
        pos = hw_i * hw_tile + lax.broadcasted_iota(jnp.int32, (hw_tile, 1), 0)
        m = (pos < hw_valid).astype(jnp.float32)
        yn = yn * m
        yi = yi * m

    sn = jnp.sum(yn, axis=0, keepdims=True)                   # (1, 256) partial GAP sums
    si = jnp.sum(yi, axis=0, keepdims=True)
    partial = jnp.concatenate(
        [sn[:, :STREAM_OUT], si[:, :STREAM_OUT],
         sn[:, STREAM_OUT:], si[:, STREAM_OUT:]], axis=0)     # (4, 128)

    @pl.when(hw_i == 0)
    def _():
        o_ref[0] = partial

    @pl.when(hw_i != 0)
    def _():
        o_ref[0] += partial

    @pl.when(hw_i == n_hw - 1)
    def _():
        o_ref[0] = o_ref[0] * inv_hw                          # sum -> mean (GAP)


def stream_gap(x3, w_big, bias2, cinv2, hw_valid):
    """x3: (B, C, HW_padded). Returns pooled features (B, 4, 128) in branch order
    [reference, reference_inverse, test, test_inverse]."""
    B, C, HWp = x3.shape
    hw_tile = _choose_hw_tile(HWp, C)
    n_hw = HWp // hw_tile
    kernel = functools.partial(
        _stream_gap_kernel,
        inv_hw=1.0 / float(hw_valid),
        hw_valid=hw_valid,
        hw_tile=hw_tile,
        needs_mask=(HWp != hw_valid),
    )
    return pl.pallas_call(
        kernel,
        out_shape=jax.ShapeDtypeStruct((B, 4, STREAM_OUT), jnp.float32),
        grid=(B, n_hw),
        in_specs=[
            pl.BlockSpec((1, C, hw_tile), lambda b, h: (b, 0, h)),
            pl.BlockSpec((C, 2 * STREAM_OUT), lambda b, h: (0, 0)),
            pl.BlockSpec((1, 2 * STREAM_OUT), lambda b, h: (0, 0)),
            pl.BlockSpec((1, 2 * STREAM_OUT), lambda b, h: (0, 0)),
        ],
        out_specs=pl.BlockSpec((1, 4, STREAM_OUT), lambda b, h: (b, 0, 0)),
        compiler_params=pltpu.CompilerParams(
            dimension_semantics=("parallel", "arbitrary")),
    )(x3, w_big, bias2, cinv2)


def _classifier_kernel(p_ref, w1_ref, b1_ref, w2_ref, b2_ref, w3_ref, b3_ref, o_ref):
    # p_ref: (B, 4, 128) pooled stream features; o_ref: (3B, 1)
    p = p_ref[...]
    B = p.shape[0]
    ref_p, refinv_p, test_p, testinv_p = p[:, 0, :], p[:, 1, :], p[:, 2, :], p[:, 3, :]

    # cat(a, b) @ W1 == a @ W1[:128] + b @ W1[128:]  -> 2 consolidated matmuls.
    pall = jnp.concatenate([ref_p, refinv_p, test_p, testinv_p], axis=0)   # (4B, 128)
    w1a = w1_ref[:STREAM_OUT, :]
    w1b = w1_ref[STREAM_OUT:, :]
    a = jnp.dot(pall, w1a, preferred_element_type=jnp.float32)             # (4B, 256)
    bm = jnp.dot(pall, w1b, preferred_element_type=jnp.float32)            # (4B, 256)

    a_ref, a_test = a[0:B], a[2 * B:3 * B]
    bm_refinv, bm_test, bm_testinv = bm[B:2 * B], bm[2 * B:3 * B], bm[3 * B:4 * B]

    # head order: cat_1 = cat(test, ref_inv), cat_2 = cat(ref, test), cat_3 = cat(ref, test_inv)
    h = jnp.concatenate([a_test + bm_refinv,
                         a_ref + bm_test,
                         a_ref + bm_testinv], axis=0)                      # (3B, 256)
    h = jnp.maximum(h + b1_ref[...], 0.0)
    h = jnp.maximum(jnp.dot(h, w2_ref[...], preferred_element_type=jnp.float32)
                    + b2_ref[...], 0.0)
    out = jax.nn.sigmoid(jnp.dot(h, w3_ref[...], preferred_element_type=jnp.float32)
                         + b3_ref[...])                                    # (3B, 1)
    o_ref[...] = out


def classifier(pooled, w1, b1, w2, b2, w3, b3):
    """pooled: (B, 4, 128) -> (3B, 1) sigmoid scores, heads stacked [cat_1, cat_2, cat_3]."""
    B = pooled.shape[0]
    return pl.pallas_call(
        _classifier_kernel,
        out_shape=jax.ShapeDtypeStruct((3 * B, 1), jnp.float32),
        grid=(1,),
        in_specs=[
            pl.BlockSpec(pooled.shape, lambda i: (0, 0, 0)),
            pl.BlockSpec(w1.shape, lambda i: (0, 0)),
            pl.BlockSpec(b1.shape, lambda i: (0, 0)),
            pl.BlockSpec(w2.shape, lambda i: (0, 0)),
            pl.BlockSpec(b2.shape, lambda i: (0, 0)),
            pl.BlockSpec(w3.shape, lambda i: (0, 0)),
            pl.BlockSpec(b3.shape, lambda i: (0, 0)),
        ],
        out_specs=pl.BlockSpec((3 * B, 1), lambda i: (0, 0)),
    )(pooled, w1, b1, w2, b2, w3, b3)


def init_params(key, cin_half):
    ks = jax.random.split(key, 8)

    def lin(kw, kb, fan_in, fan_out):
        scale = 1.0 / jnp.sqrt(jnp.float32(fan_in))
        w = jax.random.uniform(kw, (fan_in, fan_out), jnp.float32, -scale, scale)
        b = jax.random.uniform(kb, (1, fan_out), jnp.float32, -scale, scale)
        return w, b

    sw, sb = lin(ks[0], ks[1], cin_half, STREAM_OUT)   # stream 1x1 conv
    w1, b1 = lin(ks[2], ks[3], 256, 256)
    w2, b2 = lin(ks[4], ks[5], 256, 256)
    w3, b3 = lin(ks[6], ks[7], 256, 1)
    return dict(sw=sw, sb=sb, w1=w1, b1=b1, w2=w2, b2=b2, w3=w3, b3=b3)


@jax.jit
def net_forward(x, params):
    B, C, H, W = x.shape
    HW = H * W
    x3 = x.reshape(B, C, HW)                               # keep full C second-minor
    HWp = -(-HW // 128) * 128
    if HWp != HW:                                          # pad lanes to multiple of 128
        x3 = jnp.pad(x3, ((0, 0), (0, 0), (0, HWp - HW)))

    w, b = params["sw"], params["sb"]                      # (half,128), (1,128)
    zeros = jnp.zeros_like(w)
    # block-diagonal weight: ref-half -> cols :128, test-half -> cols 128:
    w_big = jnp.concatenate([jnp.concatenate([w, zeros], axis=1),
                             jnp.concatenate([zeros, w], axis=1)], axis=0)   # (C, 256)
    c = 255.0 * jnp.sum(w, axis=0, keepdims=True) + b      # inverse-branch constant
    bias2 = jnp.concatenate([b, b], axis=1)                # (1, 256)
    cinv2 = jnp.concatenate([c, c], axis=1)                # (1, 256)

    pooled = stream_gap(x3, w_big, bias2, cinv2, HW)       # (B, 4, 128)
    out = classifier(pooled, params["w1"], params["b1"],
                     params["w2"], params["b2"],
                     params["w3"], params["b3"])           # (3B, 1)
    out = out.reshape(3, B, 1)
    return out[0], out[1], out[2]


def _reference(x, p):
    """Pure-JAX reference mirroring the PyTorch forward (same synthesized stream)."""
    half = x.shape[1] // 2
    ref, test = x[:, :half], x[:, half:]
    refi, testi = 255.0 - ref, 255.0 - test

    def stream_branch(v):
        y = jnp.einsum('bchw,co->bohw', v, p["sw"]) + p["sb"][0][None, :, None, None]
        y = jnp.maximum(y, 0.0)
        return jnp.mean(y, axis=(2, 3))                    # GAP -> (B, 128)

    f_ref, f_refi, f_test, f_testi = map(stream_branch, (ref, refi, test, testi))

    def head(a, bfeat):
        h = jnp.concatenate([a, bfeat], axis=1)
        h = jnp.maximum(h @ p["w1"] + p["b1"], 0.0)
        h = jnp.maximum(h @ p["w2"] + p["b2"], 0.0)
        return jax.nn.sigmoid(h @ p["w3"] + p["b3"])

    return head(f_test, f_refi), head(f_ref, f_test), head(f_ref, f_testi)


if __name__ == "__main__":
    import numpy as np

    key = jax.random.PRNGKey(0)
    k_x, k_p = jax.random.split(key)
    B, C, H, W = 2, 8, 16, 16          # C=8 -> half=4 channels per stream input
    x = jax.random.uniform(k_x, (B, C, H, W), jnp.float32, 0.0, 255.0)
    params = init_params(k_p, C // 2)

    o1, o2, o3 = net_forward(x, params)
    jax.block_until_ready((o1, o2, o3))
    assert o1.shape == (B, 1) and o2.shape == (B, 1) and o3.shape == (B, 1)

    r1, r2, r3 = _reference(x, params)
    np.testing.assert_allclose(np.asarray(o1), np.asarray(r1), rtol=2e-3, atol=2e-3)
    np.testing.assert_allclose(np.asarray(o2), np.asarray(r2), rtol=2e-3, atol=2e-3)
    np.testing.assert_allclose(np.asarray(o3), np.asarray(r3), rtol=2e-3, atol=2e-3)
    print("KERNEL_OK")
</pallas_src>

<mosaic_0001>
module attributes {stable_mosaic.version = 11 : i64} {
  func.func @_stream_gap_kernel(%arg0: i32, %arg1: i32, %arg2: memref<1x8x256xf32, #tpu.memory_space<vmem>>, %arg3: memref<8x256xf32, #tpu.memory_space<vmem>>, %arg4: memref<1x256xf32, #tpu.memory_space<vmem>>, %arg5: memref<1x256xf32, #tpu.memory_space<vmem>>, %arg6: memref<1x4x128xf32, #tpu.memory_space<vmem>>) attributes {dimension_semantics = [#tpu.dimension_semantics<parallel>, #tpu.dimension_semantics<arbitrary>], iteration_bounds = array<i64: 2, 1>, scalar_prefetch = 0 : i64, scratch_operands = 0 : i64, tpu.core_type = #tpu.core_type<tc>, window_params = [{transform_indices = @transform_0, window_bounds = array<i64: 1, 8, 256>}, {pipeline_mode = #tpu.pipeline_mode<synchronous>, transform_indices = @transform_1, window_bounds = array<i64: 8, 256>}, {pipeline_mode = #tpu.pipeline_mode<synchronous>, transform_indices = @transform_2, window_bounds = array<i64: 1, 256>}, {pipeline_mode = #tpu.pipeline_mode<synchronous>, transform_indices = @transform_3, window_bounds = array<i64: 1, 256>}, {transform_indices = @transform_4, window_bounds = array<i64: 1, 4, 128>}]} {
    %c0 = arith.constant 0 : index
    %c0_0 = arith.constant 0 : index
    %c0_1 = arith.constant 0 : index
    %0 = vector.load %arg2[%c0, %c0_0, %c0_1] : memref<1x8x256xf32, #tpu.memory_space<vmem>>, vector<1x8x256xf32>
    %1 = vector.shape_cast %0 : vector<1x8x256xf32> to vector<8x256xf32>
    %c0_2 = arith.constant 0 : index
    %c0_3 = arith.constant 0 : index
    %2 = vector.load %arg3[%c0_2, %c0_3] : memref<8x256xf32, #tpu.memory_space<vmem>>, vector<8x256xf32>
    %cst = arith.constant dense<0.000000e+00> : vector<256x256xf32>
    %3 = tpu.matmul %1, %2, %cst {dimension_numbers = #tpu.dot_dimension_numbers<[0], [0], [1], [1], [0, 1, 1, 1], [], []>} : vector<8x256xf32>, vector<8x256xf32>, vector<256x256xf32> -> vector<256x256xf32>
    %c0_4 = arith.constant 0 : index
    %c0_5 = arith.constant 0 : index
    %4 = vector.load %arg4[%c0_4, %c0_5] : memref<1x256xf32, #tpu.memory_space<vmem>>, vector<1x256xf32>
    %5 = vector.broadcast %4 : vector<1x256xf32> to vector<256x256xf32>
    %6 = arith.addf %3, %5 : vector<256x256xf32>
    %cst_6 = arith.constant 0.000000e+00 : f32
    %7 = vector.broadcast %cst_6 : f32 to vector<256x256xf32>
    %8 = arith.maximumf %6, %7 : vector<256x256xf32>
    %c0_7 = arith.constant 0 : index
    %c0_8 = arith.constant 0 : index
    %9 = vector.load %arg5[%c0_7, %c0_8] : memref<1x256xf32, #tpu.memory_space<vmem>>, vector<1x256xf32>
    %10 = vector.broadcast %9 : vector<1x256xf32> to vector<256x256xf32>
    %11 = arith.subf %10, %3 : vector<256x256xf32>
    %cst_9 = arith.constant 0.000000e+00 : f32
    %12 = vector.broadcast %cst_9 : f32 to vector<256x256xf32>
    %13 = arith.maximumf %11, %12 : vector<256x256xf32>
    %cst_10 = arith.constant dense<0.000000e+00> : vector<256xf32>
    %14 = vector.multi_reduction <add>, %8, %cst_10 [0] : vector<256x256xf32> to vector<256xf32>
    %15 = vector.shape_cast %14 : vector<256xf32> to vector<1x256xf32>
    %cst_11 = arith.constant dense<0.000000e+00> : vector<256xf32>
    %16 = vector.multi_reduction <add>, %13, %cst_11 [0] : vector<256x256xf32> to vector<256xf32>
    %17 = vector.shape_cast %16 : vector<256xf32> to vector<1x256xf32>
    %18 = vector.extract_strided_slice %15 {offsets = [0, 0], sizes = [1, 128], strides = [1, 1]} : vector<1x256xf32> to vector<1x128xf32>
    %19 = vector.extract_strided_slice %17 {offsets = [0, 0], sizes = [1, 128], strides = [1, 1]} : vector<1x256xf32> to vector<1x128xf32>
    %20 = vector.extract_strided_slice %15 {offsets = [0, 128], sizes = [1, 128], strides = [1, 1]} : vector<1x256xf32> to vector<1x128xf32>
    %21 = vector.extract_strided_slice %17 {offsets = [0, 128], sizes = [1, 128], strides = [1, 1]} : vector<1x256xf32> to vector<1x128xf32>
    %22 = tpu.concatenate %18, %19, %20, %21 in 0 : vector<1x128xf32>, vector<1x128xf32>, vector<1x128xf32>, vector<1x128xf32> -> vector<4x128xf32>
    %c0_i32 = arith.constant 0 : i32
    %23 = arith.cmpi eq, %arg1, %c0_i32 : i32
    %24 = arith.extui %23 : i1 to i32
    %c0_i32_12 = arith.constant 0 : i32
    %25 = arith.cmpi ne, %24, %c0_i32_12 : i32
    scf.if %25 {
      %c0_17 = arith.constant 0 : index
      %c0_18 = arith.constant 0 : index
      %c0_19 = arith.constant 0 : index
      %32 = vector.load %arg6[%c0_17, %c0_18, %c0_19] : memref<1x4x128xf32, #tpu.memory_space<vmem>>, vector<1x4x128xf32>
      %33 = vector.shape_cast %32 : vector<1x4x128xf32> to vector<4x128xf32>
      %34 = vector.shape_cast %22 : vector<4x128xf32> to vector<1x4x128xf32>
      tpu.vector_store %arg6[%c0_17, %c0_18, %c0_19], %34 {strides = array<i32>} : memref<1x4x128xf32, #tpu.memory_space<vmem>>, vector<1x4x128xf32>,
    } else {
    }
    %c0_i32_13 = arith.constant 0 : i32
    %26 = arith.cmpi ne, %arg1, %c0_i32_13 : i32
    %27 = arith.extui %26 : i1 to i32
    %c0_i32_14 = arith.constant 0 : i32
    %28 = arith.cmpi ne, %27, %c0_i32_14 : i32
    scf.if %28 {
      %c0_17 = arith.constant 0 : index
      %c0_18 = arith.constant 0 : index
      %c0_19 = arith.constant 0 : index
      %32 = vector.load %arg6[%c0_17, %c0_18, %c0_19] : memref<1x4x128xf32, #tpu.memory_space<vmem>>, vector<1x4x128xf32>
      %33 = vector.shape_cast %32 : vector<1x4x128xf32> to vector<4x128xf32>
      %34 = arith.addf %33, %22 : vector<4x128xf32>
      %c0_20 = arith.constant 0 : index
      %c0_21 = arith.constant 0 : index
      %c0_22 = arith.constant 0 : index
      %35 = vector.load %arg6[%c0_20, %c0_21, %c0_22] : memref<1x4x128xf32, #tpu.memory_space<vmem>>, vector<1x4x128xf32>
      %36 = vector.shape_cast %35 : vector<1x4x128xf32> to vector<4x128xf32>
      %37 = vector.shape_cast %34 : vector<4x128xf32> to vector<1x4x128xf32>
      tpu.vector_store %arg6[%c0_20, %c0_21, %c0_22], %37 {strides = array<i32>} : memref<1x4x128xf32, #tpu.memory_space<vmem>>, vector<1x4x128xf32>,
    } else {
    }
    %c0_i32_15 = arith.constant 0 : i32
    %29 = arith.cmpi eq, %arg1, %c0_i32_15 : i32
    %30 = arith.extui %29 : i1 to i32
    %c0_i32_16 = arith.constant 0 : i32
    %31 = arith.cmpi ne, %30, %c0_i32_16 : i32
    scf.if %31 {
      %c0_17 = arith.constant 0 : index
      %c0_18 = arith.constant 0 : index
      %c0_19 = arith.constant 0 : index
      %32 = vector.load %arg6[%c0_17, %c0_18, %c0_19] : memref<1x4x128xf32, #tpu.memory_space<vmem>>, vector<1x4x128xf32>
      %33 = vector.shape_cast %32 : vector<1x4x128xf32> to vector<4x128xf32>
      %cst_20 = arith.constant 3.906250e-03 : f32
      %34 = vector.broadcast %cst_20 : f32 to vector<4x128xf32>
      %35 = arith.mulf %33, %34 : vector<4x128xf32>
      %c0_21 = arith.constant 0 : index
      %c0_22 = arith.constant 0 : index
      %c0_23 = arith.constant 0 : index
      %36 = vector.load %arg6[%c0_21, %c0_22, %c0_23] : memref<1x4x128xf32, #tpu.memory_space<vmem>>, vector<1x4x128xf32>
      %37 = vector.shape_cast %36 : vector<1x4x128xf32> to vector<4x128xf32>
      %38 = vector.shape_cast %35 : vector<4x128xf32> to vector<1x4x128xf32>
      tpu.vector_store %arg6[%c0_21, %c0_22, %c0_23], %38 {strides = array<i32>} : memref<1x4x128xf32, #tpu.memory_space<vmem>>, vector<1x4x128xf32>,
    } else {
    }
    return
  }
  func.func @transform_0(%arg0: i32, %arg1: i32) -> (i32, i32, i32) {
    %c0_i32 = arith.constant 0 : i32
    %c0_i32_0 = arith.constant 0 : i32
    return %arg0, %c0_i32, %arg1 : i32, i32, i32
  }
  func.func @transform_1(%arg0: i32, %arg1: i32) -> (i32, i32) {
    %c0_i32 = arith.constant 0 : i32
    %c0_i32_0 = arith.constant 0 : i32
    %c0_i32_1 = arith.constant 0 : i32
    return %c0_i32, %c0_i32_0 : i32, i32
  }
  func.func @transform_2(%arg0: i32, %arg1: i32) -> (i32, i32) {
    %c0_i32 = arith.constant 0 : i32
    %c0_i32_0 = arith.constant 0 : i32
    %c0_i32_1 = arith.constant 0 : i32
    return %c0_i32, %c0_i32_0 : i32, i32
  }
  func.func @transform_3(%arg0: i32, %arg1: i32) -> (i32, i32) {
    %c0_i32 = arith.constant 0 : i32
    %c0_i32_0 = arith.constant 0 : i32
    %c0_i32_1 = arith.constant 0 : i32
    return %c0_i32, %c0_i32_0 : i32, i32
  }
  func.func @transform_4(%arg0: i32, %arg1: i32) -> (i32, i32, i32) {
    %c0_i32 = arith.constant 0 : i32
    %c0_i32_0 = arith.constant 0 : i32
    %c0_i32_1 = arith.constant 0 : i32
    return %arg0, %c0_i32, %c0_i32_0 : i32, i32, i32
  }
}

module attributes {stable_mosaic.version = 11 : i64} {
  func.func @_classifier_kernel(%arg0: i32, %arg1: memref<2x4x128xf32, #tpu.memory_space<vmem>>, %arg2: memref<256x256xf32, #tpu.memory_space<vmem>>, %arg3: memref<1x256xf32, #tpu.memory_space<vmem>>, %arg4: memref<256x256xf32, #tpu.memory_space<vmem>>, %arg5: memref<1x256xf32, #tpu.memory_space<vmem>>, %arg6: memref<256x1xf32, #tpu.memory_space<vmem>>, %arg7: memref<1x1xf32, #tpu.memory_space<vmem>>, %arg8: memref<6x1xf32, #tpu.memory_space<vmem>>) attributes {dimension_semantics = [#tpu.dimension_semantics<arbitrary>], iteration_bounds = array<i64: 1>, scalar_prefetch = 0 : i64, scratch_operands = 0 : i64, tpu.core_type = #tpu.core_type<tc>, window_params = [{pipeline_mode = #tpu.pipeline_mode<synchronous>, transform_indices = @transform_0, window_bounds = array<i64: 2, 4, 128>}, {pipeline_mode = #tpu.pipeline_mode<synchronous>, transform_indices = @transform_1, window_bounds = array<i64: 256, 256>}, {pipeline_mode = #tpu.pipeline_mode<synchronous>, transform_indices = @transform_2, window_bounds = array<i64: 1, 256>}, {pipeline_mode = #tpu.pipeline_mode<synchronous>, transform_indices = @transform_3, window_bounds = array<i64: 256, 256>}, {pipeline_mode = #tpu.pipeline_mode<synchronous>, transform_indices = @transform_4, window_bounds = array<i64: 1, 256>}, {pipeline_mode = #tpu.pipeline_mode<synchronous>, transform_indices = @transform_5, window_bounds = array<i64: 256, 1>}, {pipeline_mode = #tpu.pipeline_mode<synchronous>, transform_indices = @transform_6, window_bounds = array<i64: 1, 1>}, {pipeline_mode = #tpu.pipeline_mode<synchronous>, transform_indices = @transform_7, window_bounds = array<i64: 6, 1>}]} {
    %c0 = arith.constant 0 : index
    %c0_0 = arith.constant 0 : index
    %c0_1 = arith.constant 0 : index
    %0 = vector.load %arg1[%c0, %c0_0, %c0_1] : memref<2x4x128xf32, #tpu.memory_space<vmem>>, vector<2x4x128xf32>
    %1 = vector.extract_strided_slice %0 {offsets = [0, 0, 0], sizes = [2, 1, 128], strides = [1, 1, 1]} : vector<2x4x128xf32> to vector<2x1x128xf32>
    %2 = vector.shape_cast %1 : vector<2x1x128xf32> to vector<2x128xf32>
    %3 = vector.extract_strided_slice %0 {offsets = [0, 1, 0], sizes = [2, 1, 128], strides = [1, 1, 1]} : vector<2x4x128xf32> to vector<2x1x128xf32>
    %4 = vector.shape_cast %3 : vector<2x1x128xf32> to vector<2x128xf32>
    %5 = vector.extract_strided_slice %0 {offsets = [0, 2, 0], sizes = [2, 1, 128], strides = [1, 1, 1]} : vector<2x4x128xf32> to vector<2x1x128xf32>
    %6 = vector.shape_cast %5 : vector<2x1x128xf32> to vector<2x128xf32>
    %7 = vector.extract_strided_slice %0 {offsets = [0, 3, 0], sizes = [2, 1, 128], strides = [1, 1, 1]} : vector<2x4x128xf32> to vector<2x1x128xf32>
    %8 = vector.shape_cast %7 : vector<2x1x128xf32> to vector<2x128xf32>
    %9 = tpu.concatenate %2, %4, %6, %8 in 0 : vector<2x128xf32>, vector<2x128xf32>, vector<2x128xf32>, vector<2x128xf32> -> vector<8x128xf32>
    %c0_2 = arith.constant 0 : index
    %c0_3 = arith.constant 0 : index
    %10 = vector.load %arg2[%c0_2, %c0_3] : memref<256x256xf32, #tpu.memory_space<vmem>>, vector<128x256xf32>
    %c128 = arith.constant 128 : index
    %c0_4 = arith.constant 0 : index
    %11 = vector.load %arg2[%c128, %c0_4] : memref<256x256xf32, #tpu.memory_space<vmem>>, vector<128x256xf32>
    %cst = arith.constant dense<0.000000e+00> : vector<8x256xf32>
    %12 = tpu.matmul %9, %10, %cst {dimension_numbers = #tpu.dot_dimension_numbers<[1], [0], [0], [1], [0, 0, 1, 1], [], []>} : vector<8x128xf32>, vector<128x256xf32>, vector<8x256xf32> -> vector<8x256xf32>
    %cst_5 = arith.constant dense<0.000000e+00> : vector<8x256xf32>
    %13 = tpu.matmul %9, %11, %cst_5 {dimension_numbers = #tpu.dot_dimension_numbers<[1], [0], [0], [1], [0, 0, 1, 1], [], []>} : vector<8x128xf32>, vector<128x256xf32>, vector<8x256xf32> -> vector<8x256xf32>
    %14 = vector.extract_strided_slice %12 {offsets = [0, 0], sizes = [2, 256], strides = [1, 1]} : vector<8x256xf32> to vector<2x256xf32>
    %15 = vector.extract_strided_slice %12 {offsets = [4, 0], sizes = [2, 256], strides = [1, 1]} : vector<8x256xf32> to vector<2x256xf32>
    %16 = vector.extract_strided_slice %13 {offsets = [2, 0], sizes = [2, 256], strides = [1, 1]} : vector<8x256xf32> to vector<2x256xf32>
    %17 = vector.extract_strided_slice %13 {offsets = [4, 0], sizes = [2, 256], strides = [1, 1]} : vector<8x256xf32> to vector<2x256xf32>
    %18 = vector.extract_strided_slice %13 {offsets = [6, 0], sizes = [2, 256], strides = [1, 1]} : vector<8x256xf32> to vector<2x256xf32>
    %19 = arith.addf %15, %16 : vector<2x256xf32>
    %20 = arith.addf %14, %17 : vector<2x256xf32>
    %21 = arith.addf %14, %18 : vector<2x256xf32>
    %22 = tpu.concatenate %19, %20, %21 in 0 : vector<2x256xf32>, vector<2x256xf32>, vector<2x256xf32> -> vector<6x256xf32>
    %c0_6 = arith.constant 0 : index
    %c0_7 = arith.constant 0 : index
    %23 = vector.load %arg3[%c0_6, %c0_7] : memref<1x256xf32, #tpu.memory_space<vmem>>, vector<1x256xf32>
    %24 = vector.broadcast %23 : vector<1x256xf32> to vector<6x256xf32>
    %25 = arith.addf %22, %24 : vector<6x256xf32>
    %cst_8 = arith.constant 0.000000e+00 : f32
    %26 = vector.broadcast %cst_8 : f32 to vector<6x256xf32>
    %27 = arith.maximumf %25, %26 : vector<6x256xf32>
    %c0_9 = arith.constant 0 : index
    %c0_10 = arith.constant 0 : index
    %28 = vector.load %arg4[%c0_9, %c0_10] : memref<256x256xf32, #tpu.memory_space<vmem>>, vector<256x256xf32>
    %cst_11 = arith.constant dense<0.000000e+00> : vector<6x256xf32>
    %29 = tpu.matmul %27, %28, %cst_11 {dimension_numbers = #tpu.dot_dimension_numbers<[1], [0], [0], [1], [0, 0, 1, 1], [], []>} : vector<6x256xf32>, vector<256x256xf32>, vector<6x256xf32> -> vector<6x256xf32>
    %c0_12 = arith.constant 0 : index
    %c0_13 = arith.constant 0 : index
    %30 = vector.load %arg5[%c0_12, %c0_13] : memref<1x256xf32, #tpu.memory_space<vmem>>, vector<1x256xf32>
    %31 = vector.broadcast %30 : vector<1x256xf32> to vector<6x256xf32>
    %32 = arith.addf %29, %31 : vector<6x256xf32>
    %cst_14 = arith.constant 0.000000e+00 : f32
    %33 = vector.broadcast %cst_14 : f32 to vector<6x256xf32>
    %34 = arith.maximumf %32, %33 : vector<6x256xf32>
    %c0_15 = arith.constant 0 : index
    %c0_16 = arith.constant 0 : index
    %35 = vector.load %arg6[%c0_15, %c0_16] : memref<256x1xf32, #tpu.memory_space<vmem>>, vector<256x1xf32>
    %cst_17 = arith.constant dense<0.000000e+00> : vector<6x1xf32>
    %36 = tpu.matmul %34, %35, %cst_17 {dimension_numbers = #tpu.dot_dimension_numbers<[1], [0], [0], [1], [0, 0, 1, 1], [], []>} : vector<6x256xf32>, vector<256x1xf32>, vector<6x1xf32> -> vector<6x1xf32>
    %c0_18 = arith.constant 0 : index
    %c0_19 = arith.constant 0 : index
    %37 = vector.load %arg7[%c0_18, %c0_19] : memref<1x1xf32, #tpu.memory_space<vmem>>, vector<1x1xf32>
    %38 = vector.broadcast %37 : vector<1x1xf32> to vector<6x1xf32>
    %39 = arith.addf %36, %38 : vector<6x1xf32>
    %40 = arith.negf %39 : vector<6x1xf32>
    %41 = math.exp %40 : vector<6x1xf32>
    %cst_20 = arith.constant 1.000000e+00 : f32
    %42 = vector.broadcast %cst_20 : f32 to vector<6x1xf32>
    %43 = arith.addf %42, %41 : vector<6x1xf32>
    %44 = arith.divf %42, %43 : vector<6x1xf32>
    %c0_21 = arith.constant 0 : index
    %c0_22 = arith.constant 0 : index
    %45 = vector.load %arg8[%c0_21, %c0_22] : memref<6x1xf32, #tpu.memory_space<vmem>>, vector<6x1xf32>
    tpu.vector_store %arg8[%c0_21, %c0_22], %44 {strides = array<i32>} : memref<6x1xf32, #tpu.memory_space<vmem>>, vector<6x1xf32>,
    return
  }
  func.func @transform_0(%arg0: i32) -> (i32, i32, i32) {
    %c0_i32 = arith.constant 0 : i32
    %c0_i32_0 = arith.constant 0 : i32
    %c0_i32_1 = arith.constant 0 : i32
    %c0_i32_2 = arith.constant 0 : i32
    return %c0_i32, %c0_i32_0, %c0_i32_1 : i32, i32, i32
  }
  func.func @transform_1(%arg0: i32) -> (i32, i32) {
    %c0_i32 = arith.constant 0 : i32
    %c0_i32_0 = arith.constant 0 : i32
    %c0_i32_1 = arith.constant 0 : i32
    return %c0_i32, %c0_i32_0 : i32, i32
  }
  func.func @transform_2(%arg0: i32) -> (i32, i32) {
    %c0_i32 = arith.constant 0 : i32
    %c0_i32_0 = arith.constant 0 : i32
    %c0_i32_1 = arith.constant 0 : i32
    return %c0_i32, %c0_i32_0 : i32, i32
  }
  func.func @transform_3(%arg0: i32) -> (i32, i32) {
    %c0_i32 = arith.constant 0 : i32
    %c0_i32_0 = arith.constant 0 : i32
    %c0_i32_1 = arith.constant 0 : i32
    return %c0_i32, %c0_i32_0 : i32, i32
  }
  func.func @transform_4(%arg0: i32) -> (i32, i32) {
    %c0_i32 = arith.constant 0 : i32
    %c0_i32_0 = arith.constant 0 : i32
    %c0_i32_1 = arith.constant 0 : i32
    return %c0_i32, %c0_i32_0 : i32, i32
  }
  func.func @transform_5(%arg0: i32) -> (i32, i32) {
    %c0_i32 = arith.constant 0 : i32
    %c0_i32_0 = arith.constant 0 : i32
    %c0_i32_1 = arith.constant 0 : i32
    return %c0_i32, %c0_i32_0 : i32, i32
  }
  func.func @transform_6(%arg0: i32) -> (i32, i32) {
    %c0_i32 = arith.constant 0 : i32
    %c0_i32_0 = arith.constant 0 : i32
    %c0_i32_1 = arith.constant 0 : i32
    return %c0_i32, %c0_i32_0 : i32, i32
  }
  func.func @transform_7(%arg0: i32) -> (i32, i32) {
    %c0_i32 = arith.constant 0 : i32
    %c0_i32_0 = arith.constant 0 : i32
    %c0_i32_1 = arith.constant 0 : i32
    return %c0_i32, %c0_i32_0 : i32, i32
  }
}

</mosaic_0001>

<llo_original>
// kernel: net_forward.2
$region0: #{net_forward.2}
  #allocation0 [shape = 'u32[]', space=smem, size = 0x4, offset = 0x4, fixed_abs, tag = 'smem constant byte address 0x4 - core index']
  #allocation1 [shape = 'u32[72,128]{1,0:T(1,128)}', space=vmem, size = 0x9000, scoped, tag = 'internal scratch']
  %s0 = inlined_call_operand.vmem [shape: f32[2,8,256], index: 0, kind: input, shape index: {}]
  %s1 = inlined_call_operand.vmem [shape: f32[8,256], index: 1, kind: input, shape index: {}]
  %s2 = inlined_call_operand.vmem [shape: f32[1,256], index: 2, kind: input, shape index: {}]
  %s3 = inlined_call_operand.vmem [shape: f32[1,256], index: 3, kind: input, shape index: {}]
  %s4 = inlined_call_operand.vmem [shape: f32[2,4,128], index: 4, kind: output, shape index: {}]
  %s5 = sld [smem:[#allocation0]]
  $region61: #{net_forward.2} parent=0
    _
  %s7 = ssub.s32 1, %s5
  %s8 = scalar_select 0, %s7, %s5
  loop: start=0, step=1, limit=4
  $region2: #{net_forward.2} parent=0 // loop_pre_header
    _
  $region3: #{net_forward.2} parent=0 // loop_header
    %s10 = sphi 0, %s14
    %p11 = scmp.ge.s32.totalorder %s10, 4
    %s17 = sphi 0, %s29
    %s18 = sphi 0, %s25
    %s19 = sphi 0, %s17
    %s20 = sphi 0, %s18
    %s21 = sphi 0, %s19
    %s22 = sphi 0, %s20
    %s34 = sphi 0, %s36
    %s37 = sphi 0, %s34
    %s38 = sphi 0, %s37
    %s54 = sphi 0, %s38
    %s58 = sphi 0, %s58
    %s60 = sphi 0, %s58
    %s61 = sphi 0, %s60
    %s75 = sphi 0, %s61
    %s79 = sphi 0, %s79
    %s81 = sphi 0, %s79
    %s82 = sphi 0, %s81
    %s96 = sphi 0, %s82
    %s100 = sphi 0, %s100
    %s102 = sphi 0, %s100
    %s103 = sphi 0, %s102
    %s117 = sphi 0, %s103
    %s123 = sphi 0, %s125
    %s126 = sphi 0, %s123
    %s127 = sphi 0, %s126
    %s143 = sphi 0, %s127
  $region4: #{net_forward.2} parent=0 // loop_header_branch
    %13 = sbr.rel (%p11) target = $region8
  $region5: #{net_forward.2} parent=0 // loop_body
    %s15 = ssub.s32 %s10, 1
    %s16 = ssub.s32 %s10, 2
    %s23 = sadd.s32 1, %s18
    %p24 = scmp.ge.s32.totalorder %s23, 1
    %s25 = scalar_select %p24, 0, %s23
    %s26 = sadd.s32 1, %s17
    %s27 = scalar_select %p24, %s26, %s17
    %p28 = scmp.ge.s32.totalorder %s27, 2
    %s29 = scalar_select %p28, 0, %s27
    %s30 = ssub.s32 %s17, %s29
    %s31 = ssub.s32 %s18, %s25
    %s32 = sor.u32 %s30, %s31
    %p33 = scmp.eq.s32.totalorder %s32, 0
    %s35 = sadd.s32 %s34, 1
    %s36 = scalar_select %p33, %s34, %s35
    %p39 = pneg %p33
    %p40 = scmp.eq.s32.totalorder %s10, 1
    %p41 = por %p39, %p40
    %p42 = scmp.ne.s32.totalorder %s34, %s37
    %p43 = scmp.eq.s32.totalorder %s10, 0
    %p44 = por %p42, %p43
    %p45 = scmp.ne.s32.totalorder %s34, %s37
    %p46 = scmp.eq.s32.totalorder %s15, 1
    %p47 = por %p45, %p46
    %p48 = scmp.ne.s32.totalorder %s37, %s38
    %p49 = scmp.eq.s32.totalorder %s15, 0
    %p50 = por %p48, %p49
    %p51 = scmp.ne.s32.totalorder %s37, %s38
    %p52 = scmp.eq.s32.totalorder %s16, 1
    %p53 = por %p51, %p52
    %p55 = scmp.ne.s32.totalorder %s38, %s54
    %p56 = scmp.eq.s32.totalorder %s16, 0
    %p57 = por %p55, %p56
    %s59 = sadd.s32 %s58, 1
    %p62 = scmp.eq.s32.totalorder %s10, 1
    %p63 = scmp.ne.s32.totalorder %s58, %s60
    %p64 = scmp.eq.s32.totalorder %s10, 0
    %p65 = por %p63, %p64
    %p66 = scmp.ne.s32.totalorder %s58, %s60
    %p67 = scmp.eq.s32.totalorder %s15, 1
    %p68 = por %p66, %p67
    %p69 = scmp.ne.s32.totalorder %s60, %s61
    %p70 = scmp.eq.s32.totalorder %s15, 0
    %p71 = por %p69, %p70
    %p72 = scmp.ne.s32.totalorder %s60, %s61
    %p73 = scmp.eq.s32.totalorder %s16, 1
    %p74 = por %p72, %p73
    %p76 = scmp.ne.s32.totalorder %s61, %s75
    %p77 = scmp.eq.s32.totalorder %s16, 0
    %p78 = por %p76, %p77
    %s80 = sadd.s32 %s79, 1
    %p83 = scmp.eq.s32.totalorder %s10, 1
    %p84 = scmp.ne.s32.totalorder %s79, %s81
    %p85 = scmp.eq.s32.totalorder %s10, 0
    %p86 = por %p84, %p85
    %p87 = scmp.ne.s32.totalorder %s79, %s81
    %p88 = scmp.eq.s32.totalorder %s15, 1
    %p89 = por %p87, %p88
    %p90 = scmp.ne.s32.totalorder %s81, %s82
    %p91 = scmp.eq.s32.totalorder %s15, 0
    %p92 = por %p90, %p91
    %p93 = scmp.ne.s32.totalorder %s81, %s82
    %p94 = scmp.eq.s32.totalorder %s16, 1
    %p95 = por %p93, %p94
    %p97 = scmp.ne.s32.totalorder %s82, %s96
    %p98 = scmp.eq.s32.totalorder %s16, 0
    %p99 = por %p97, %p98
    %s101 = sadd.s32 %s100, 1
    %p104 = scmp.eq.s32.totalorder %s10, 1
    %p105 = scmp.ne.s32.totalorder %s100, %s102
    %p106 = scmp.eq.s32.totalorder %s10, 0
    %p107 = por %p105, %p106
    %p108 = scmp.ne.s32.totalorder %s100, %s102
    %p109 = scmp.eq.s32.totalorder %s15, 1
    %p110 = por %p108, %p109
    %p111 = scmp.ne.s32.totalorder %s102, %s103
    %p112 = scmp.eq.s32.totalorder %s15, 0
    %p113 = por %p111, %p112
    %p114 = scmp.ne.s32.totalorder %s102, %s103
    %p115 = scmp.eq.s32.totalorder %s16, 1
    %p116 = por %p114, %p115
    %p118 = scmp.ne.s32.totalorder %s103, %s117
    %p119 = scmp.eq.s32.totalorder %s16, 0
    %p120 = por %p118, %p119
    %s121 = ssub.s32 %s17, %s29
    %p122 = scmp.eq.s32.totalorder %s121, 0
    %s124 = sadd.s32 %s123, 1
    %s125 = scalar_select %p122, %s123, %s124
    %p128 = pneg %p122
    %p129 = scmp.eq.s32.totalorder %s10, 1
    %p130 = por %p128, %p129
    %p131 = scmp.ne.s32.totalorder %s123, %s126
    %p132 = scmp.eq.s32.totalorder %s10, 0
    %p133 = por %p131, %p132
    %p134 = scmp.ne.s32.totalorder %s123, %s126
    %p135 = scmp.eq.s32.totalorder %s15, 1
    %p136 = por %p134, %p135
    %p137 = scmp.ne.s32.totalorder %s126, %s127
    %p138 = scmp.eq.s32.totalorder %s15, 0
    %p139 = por %p137, %p138
    %p140 = scmp.ne.s32.totalorder %s126, %s127
    %p141 = scmp.eq.s32.totalorder %s16, 1
    %p142 = por %p140, %p141
    %p144 = scmp.ne.s32.totalorder %s127, %s143
    %p145 = scmp.eq.s32.totalorder %s16, 0
    %p146 = por %p144, %p145
    %p147 = scmp.le.s32.totalorder 1, %s10
    %p148 = scmp.lt.s32.totalorder %s10, 3
    %p149 = pnand %p147, %p148
    %p150 = pneg %p149
    // Predicated region
    $region9: #{net_forward.2} parent=5 // pred_check
      _
    $region10: #{net_forward.2} parent=5 // pred_check_branch
      %152 = sbr.rel (%p149) target = $region12
    $region11: #{net_forward.2} parent=5 // pred_region
      %s153 = ssub.s32 %s10, 1
      // Predicated region
      $region13: #{net_forward.2} parent=11 // pred_check
        %p154 = pneg %p71
      $region14: #{net_forward.2} parent=11 // pred_check_branch
        %156 = sbr.rel (%p154) target = $region16
      $region15: #{net_forward.2} parent=11 // pred_region
        _
      $region16: #{net_forward.2} parent=11 // pred_fallthru
        _
      // Predicated region
      $region17: #{net_forward.2} parent=11 // pred_check
        %p157 = pneg %p92
      $region18: #{net_forward.2} parent=11 // pred_check_branch
        %159 = sbr.rel (%p157) target = $region20
      $region19: #{net_forward.2} parent=11 // pred_region
        _
      $region20: #{net_forward.2} parent=11 // pred_fallthru
        _
      // Predicated region
      $region21: #{net_forward.2} parent=11 // pred_check
        %p160 = pneg %p113
      $region22: #{net_forward.2} parent=11 // pred_check_branch
        %162 = sbr.rel (%p160) target = $region24
      $region23: #{net_forward.2} parent=11 // pred_region
        _
      $region24: #{net_forward.2} parent=11 // pred_fallthru
        _
    $region12: #{net_forward.2} parent=5 // pred_fallthru
      _
    %p163 = scmp.lt.s32.totalorder %s10, 2
    // Predicated region
    $region25: #{net_forward.2} parent=5 // pred_check
      %p164 = pneg %p163
    $region26: #{net_forward.2} parent=5 // pred_check_branch
      %166 = sbr.rel (%p164) target = $region28
    $region27: #{net_forward.2} parent=5 // pred_region
      // Predicated region
      $region29: #{net_forward.2} parent=27 // pred_check
        %p167 = pneg %p44
      $region30: #{net_forward.2} parent=27 // pred_check_branch
        %169 = sbr.rel (%p167) target = $region32
      $region31: #{net_forward.2} parent=27 // pred_region
        %s170 = smul.u32 2, %s18
        %p171 = scmp.lt.s32.totalorder %s17, 1
        %s172 = scalar_select %p171, %s17, 1
        %p173 = scmp.lt.s32.totalorder %s170, 1
        %s174 = scalar_select %p173, %s170, 1
        %s175 = smul.addr %s172, 2
        %s176 = sadd.s32 %s174, %s175
        %s177 = smul.addr %s176, 8
        %s178 = scalar_lea.vmem %s0, %s177
        %s179 = smul.u32 2, %s18
      $region32: #{net_forward.2} parent=27 // pred_fallthru
        _
    $region28: #{net_forward.2} parent=5 // pred_fallthru
      _
    %p180 = scmp.le.s32.totalorder 1, %s10
    %p181 = scmp.lt.s32.totalorder %s10, 3
    %p182 = pnand %p180, %p181
    %p183 = pneg %p182
    // Predicated region
    $region33: #{net_forward.2} parent=5 // pred_check
      _
    $region34: #{net_forward.2} parent=5 // pred_check_branch
      %185 = sbr.rel (%p182) target = $region36
    $region35: #{net_forward.2} parent=5 // pred_region
      %s186 = ssub.s32 %s10, 1
      %s187 = smul.u32 2, %s20
      %p188 = scmp.lt.s32.totalorder %s19, 1
      %s189 = scalar_select %p188, %s19, 1
      %p190 = scmp.lt.s32.totalorder %s187, 1
      %s191 = scalar_select %p190, %s187, 1
      %s192 = smul.addr %s189, 2
      %s193 = sadd.s32 %s191, %s192
      %s194 = smul.addr %s193, 8
      %s195 = scalar_lea.vmem %s0, %s194
      %p196 = pneg %p50
      %p197 = pneg %p47
      %p198 = pneg %p71
      %p199 = pneg %p68
      %p200 = pneg %p92
      %p201 = pneg %p89
      %p202 = pneg %p113
      %p203 = pneg %p110
      %p204 = pneg %p139
      %p205 = pneg %p136
      %p206 = scmp.lt.s32.totalorder %s19, 1
      %s207 = scalar_select %p206, %s19, 1
      %s208 = smul.addr %s207, 4
      %s209 = scalar_lea.vmem %s4, %s208
      %s210 = smul.u32 2, %s20
      %p211 = scmp.lt.s32.totalorder %s19, 1
      %s212 = scalar_select %p211, %s19, 1
      %p213 = scmp.lt.s32.totalorder %s210, 1
      %s214 = scalar_select %p213, %s210, 1
      %s215 = smul.addr %s212, 2
      %s216 = sadd.s32 %s214, %s215
      %s217 = smul.addr %s216, 8
      %s218 = scalar_lea.vmem %s0, %s217
      %s219 = smul.u32 2, %s20
      %p220 = scmp.lt.s32.totalorder %s19, 1
      %s221 = scalar_select %p220, %s19, 1
      %s222 = smul.addr %s221, 4
      %s223 = scalar_lea.vmem %s4, %s222
      %v224 = vld [vmem:[%s218] sm:$0xff]
      %v225 = vld [vmem:[%s218 + $0x8] sm:$0xff]
      %v226 = vld [vmem:[%s1] sm:$0xff]
      %v227 = vld [vmem:[%s1 + $0x8] sm:$0xff]
      %228 = vxpose.xlu0.b32.start [1/16] %v224, 128
      %229 = vxpose.xlu0.b32.cont [2/16] 0.0, 128
      %230 = vxpose.xlu0.b32.cont [3/16] 0.0, 128
      %231 = vxpose.xlu0.b32.cont [4/16] 0.0, 128
      %232 = vxpose.xlu0.b32.cont [5/16] 0.0, 128
      %233 = vxpose.xlu0.b32.cont [6/16] 0.0, 128
      %234 = vxpose.xlu0.b32.cont [7/16] 0.0, 128
      %235 = vxpose.xlu0.b32.cont [8/16] 0.0, 128
      %236 = vxpose.xlu0.b32.cont [9/16] 0.0, 128
      %237 = vxpose.xlu0.b32.cont [10/16] 0.0, 128
      %238 = vxpose.xlu0.b32.cont [11/16] 0.0, 128
      %239 = vxpose.xlu0.b32.cont [12/16] 0.0, 128
      %240 = vxpose.xlu0.b32.cont [13/16] 0.0, 128
      %241 = vxpose.xlu0.b32.cont [14/16] 0.0, 128
      %242 = vxpose.xlu0.b32.cont [15/16] 0.0, 128
      %243 = vxpose.xlu0.b32.end [16/16] 0.0, 128
      %v244 = vpop.trf.xlu0
      %v245 = vpop.trf.xlu0
      %v246 = vpop.trf.xlu0
      %v247 = vpop.trf.xlu0
      %v248 = vpop.trf.xlu0
      %v249 = vpop.trf.xlu0
      %v250 = vpop.trf.xlu0
      %v251 = vpop.trf.xlu0
      %v252 = vpop.trf.xlu0
      %v253 = vpop.trf.xlu0
      %v254 = vpop.trf.xlu0
      %v255 = vpop.trf.xlu0
      %v256 = vpop.trf.xlu0
      %v257 = vpop.trf.xlu0
      %v258 = vpop.trf.xlu0
      %v259 = vpop.trf.xlu0
      %260 = vxpose.xlu0.b32.start [1/16] %v225, 128
      %261 = vxpose.xlu0.b32.cont [2/16] 0.0, 128
      %262 = vxpose.xlu0.b32.cont [3/16] 0.0, 128
      %263 = vxpose.xlu0.b32.cont [4/16] 0.0, 128
      %264 = vxpose.xlu0.b32.cont [5/16] 0.0, 128
      %265 = vxpose.xlu0.b32.cont [6/16] 0.0, 128
      %266 = vxpose.xlu0.b32.cont [7/16] 0.0, 128
      %267 = vxpose.xlu0.b32.cont [8/16] 0.0, 128
      %268 = vxpose.xlu0.b32.cont [9/16] 0.0, 128
      %269 = vxpose.xlu0.b32.cont [10/16] 0.0, 128
      %270 = vxpose.xlu0.b32.cont [11/16] 0.0, 128
      %271 = vxpose.xlu0.b32.cont [12/16] 0.0, 128
      %272 = vxpose.xlu0.b32.cont [13/16] 0.0, 128
      %273 = vxpose.xlu0.b32.cont [14/16] 0.0, 128
      %274 = vxpose.xlu0.b32.cont [15/16] 0.0, 128
      %275 = vxpose.xlu0.b32.end [16/16] 0.0, 128
      %v276 = vpop.trf.xlu0
      %v277 = vpop.trf.xlu0
      %v278 = vpop.trf.xlu0
      %v279 = vpop.trf.xlu0
      %v280 = vpop.trf.xlu0
      %v281 = vpop.trf.xlu0
      %v282 = vpop.trf.xlu0
      %v283 = vpop.trf.xlu0
      %v284 = vpop.trf.xlu0
      %v285 = vpop.trf.xlu0
      %v286 = vpop.trf.xlu0
      %v287 = vpop.trf.xlu0
      %v288 = vpop.trf.xlu0
      %v289 = vpop.trf.xlu0
      %v290 = vpop.trf.xlu0
      %v291 = vpop.trf.xlu0
      %vm292 = vcmask 64512
      %v294 = vsel %vm292, %v244, 0
      %v297 = vsel %vm292, %v245, 0
      %v300 = vsel %vm292, %v246, 0
      %v303 = vsel %vm292, %v247, 0
      %v306 = vsel %vm292, %v248, 0
      %v309 = vsel %vm292, %v249, 0
      %v312 = vsel %vm292, %v250, 0
      %v315 = vsel %vm292, %v251, 0
      %v318 = vsel %vm292, %v252, 0
      %v321 = vsel %vm292, %v253, 0
      %v324 = vsel %vm292, %v254, 0
      %v327 = vsel %vm292, %v255, 0
      %v330 = vsel %vm292, %v256, 0
      %v333 = vsel %vm292, %v257, 0
      %v336 = vsel %vm292, %v258, 0
      %v339 = vsel %vm292, %v259, 0
      %v342 = vsel %vm292, %v276, 0
      %v345 = vsel %vm292, %v277, 0
      %v348 = vsel %vm292, %v278, 0
      %v351 = vsel %vm292, %v279, 0
      %v354 = vsel %vm292, %v280, 0
      %v357 = vsel %vm292, %v281, 0
      %v360 = vsel %vm292, %v282, 0
      %v363 = vsel %vm292, %v283, 0
      %v366 = vsel %vm292, %v284, 0
      %v369 = vsel %vm292, %v285, 0
      %v372 = vsel %vm292, %v286, 0
      %v375 = vsel %vm292, %v287, 0
      %v378 = vsel %vm292, %v288, 0
      %v381 = vsel %vm292, %v289, 0
      %v384 = vsel %vm292, %v290, 0
      %v387 = vsel %vm292, %v291, 0
      %389 = vmatpush.msra.mxu0 0.0
      %390 = vmatpush.msra.mxu0 0.0
      %391 = vmatpush.msra.mxu0 0.0
      %392 = vmatpush.msra.mxu0 0.0
      %393 = vmatpush.msra.mxu0 0.0
      %394 = vmatpush.msra.mxu0 0.0
      %395 = vmatpush.msra.mxu0 0.0
      %396 = vmatpush.msra.mxu0 0.0
      %397 = vmatpush.msra.mxu0 0.0
      %398 = vmatpush.msra.mxu0 0.0
      %399 = vmatpush.msra.mxu0 0.0
      %400 = vmatpush.msra.mxu0 0.0
      %401 = vmatpush.msra.mxu0 0.0
      %402 = vmatpush.msra.mxu0 0.0
      %403 = vmatpush.msra.mxu0 0.0
      %404 = vmatpush.msra.mxu0 %v226
      %405 = vmatmul.f32.gmra.mxu0 %v294
      %v406 = vpop.f32.mrf.mxu0
      %v407 = vadd.f32 0.0, %v406
      %408 = vmatmul.f32.gmra.mxu0 %v297
      %v409 = vpop.f32.mrf.mxu0
      %v410 = vadd.f32 0.0, %v409
      %411 = vmatmul.f32.gmra.mxu0 %v300
      %v412 = vpop.f32.mrf.mxu0
      %v413 = vadd.f32 0.0, %v412
      %414 = vmatmul.f32.gmra.mxu0 %v303
      %v415 = vpop.f32.mrf.mxu0
      %v416 = vadd.f32 0.0, %v415
      %417 = vmatmul.f32.gmra.mxu0 %v306
      %v418 = vpop.f32.mrf.mxu0
      %v419 = vadd.f32 0.0, %v418
      %420 = vmatmul.f32.gmra.mxu0 %v309
      %v421 = vpop.f32.mrf.mxu0
      %v422 = vadd.f32 0.0, %v421
      %423 = vmatmul.f32.gmra.mxu0 %v312
      %v424 = vpop.f32.mrf.mxu0
      %v425 = vadd.f32 0.0, %v424
      %426 = vmatmul.f32.gmra.mxu0 %v315
      %v427 = vpop.f32.mrf.mxu0
      %v428 = vadd.f32 0.0, %v427
      %429 = vmatmul.f32.gmra.mxu0 %v318
      %v430 = vpop.f32.mrf.mxu0
      %v431 = vadd.f32 0.0, %v430
      %432 = vmatmul.f32.gmra.mxu0 %v321
      %v433 = vpop.f32.mrf.mxu0
      %v434 = vadd.f32 0.0, %v433
      %435 = vmatmul.f32.gmra.mxu0 %v324
      %v436 = vpop.f32.mrf.mxu0
      %v437 = vadd.f32 0.0, %v436
      %438 = vmatmul.f32.gmra.mxu0 %v327
      %v439 = vpop.f32.mrf.mxu0
      %v440 = vadd.f32 0.0, %v439
      %441 = vmatmul.f32.gmra.mxu0 %v330
      %v442 = vpop.f32.mrf.mxu0
      %v443 = vadd.f32 0.0, %v442
      %444 = vmatmul.f32.gmra.mxu0 %v333
      %v445 = vpop.f32.mrf.mxu0
      %v446 = vadd.f32 0.0, %v445
      %447 = vmatmul.f32.gmra.mxu0 %v336
      %v448 = vpop.f32.mrf.mxu0
      %v449 = vadd.f32 0.0, %v448
      %450 = vmatmul.f32.gmra.mxu0 %v339
      %v451 = vpop.f32.mrf.mxu0
      %v452 = vadd.f32 0.0, %v451
      %453 = vmatmul.f32.gmra.mxu0 %v342
      %v454 = vpop.f32.mrf.mxu0
      %v455 = vadd.f32 0.0, %v454
      %456 = vmatmul.f32.gmra.mxu0 %v345
      %v457 = vpop.f32.mrf.mxu0
      %v458 = vadd.f32 0.0, %v457
      %459 = vmatmul.f32.gmra.mxu0 %v348
      %v460 = vpop.f32.mrf.mxu0
      %v461 = vadd.f32 0.0, %v460
      %462 = vmatmul.f32.gmra.mxu0 %v351
      %v463 = vpop.f32.mrf.mxu0
      %v464 = vadd.f32 0.0, %v463
      %465 = vmatmul.f32.gmra.mxu0 %v354
      %v466 = vpop.f32.mrf.mxu0
      %v467 = vadd.f32 0.0, %v466
      %468 = vmatmul.f32.gmra.mxu0 %v357
      %v469 = vpop.f32.mrf.mxu0
      %v470 = vadd.f32 0.0, %v469
      %471 = vmatmul.f32.gmra.mxu0 %v360
      %v472 = vpop.f32.mrf.mxu0
      %v473 = vadd.f32 0.0, %v472
      %474 = vmatmul.f32.gmra.mxu0 %v363
      %v475 = vpop.f32.mrf.mxu0
      %v476 = vadd.f32 0.0, %v475
      %477 = vmatmul.f32.gmra.mxu0 %v366
      %v478 = vpop.f32.mrf.mxu0
      %v479 = vadd.f32 0.0, %v478
      %480 = vmatmul.f32.gmra.mxu0 %v369
      %v481 = vpop.f32.mrf.mxu0
      %v482 = vadd.f32 0.0, %v481
      %483 = vmatmul.f32.gmra.mxu0 %v372
      %v484 = vpop.f32.mrf.mxu0
      %v485 = vadd.f32 0.0, %v484
      %486 = vmatmul.f32.gmra.mxu0 %v375
      %v487 = vpop.f32.mrf.mxu0
      %v488 = vadd.f32 0.0, %v487
      %489 = vmatmul.f32.gmra.mxu0 %v378
      %v490 = vpop.f32.mrf.mxu0
      %v491 = vadd.f32 0.0, %v490
      %492 = vmatmul.f32.gmra.mxu0 %v381
      %v493 = vpop.f32.mrf.mxu0
      %v494 = vadd.f32 0.0, %v493
      %495 = vmatmul.f32.gmra.mxu0 %v384
      %v496 = vpop.f32.mrf.mxu0
      %v497 = vadd.f32 0.0, %v496
      %498 = vmatmul.f32.gmra.mxu0 %v387
      %v499 = vpop.f32.mrf.mxu0
      %v500 = vadd.f32 0.0, %v499
      %501 = vdwg.mxu0
      %502 = vmatpush.msra.mxu0 0.0
      %503 = vmatpush.msra.mxu0 0.0
      %504 = vmatpush.msra.mxu0 0.0
      %505 = vmatpush.msra.mxu0 0.0
      %506 = vmatpush.msra.mxu0 0.0
      %507 = vmatpush.msra.mxu0 0.0
      %508 = vmatpush.msra.mxu0 0.0
      %509 = vmatpush.msra.mxu0 0.0
      %510 = vmatpush.msra.mxu0 0.0
      %511 = vmatpush.msra.mxu0 0.0
      %512 = vmatpush.msra.mxu0 0.0
      %513 = vmatpush.msra.mxu0 0.0
      %514 = vmatpush.msra.mxu0 0.0
      %515 = vmatpush.msra.mxu0 0.0
      %516 = vmatpush.msra.mxu0 0.0
      %517 = vmatpush.msra.mxu0 %v227
      %518 = vmatmul.f32.gmra.mxu0 %v294
      %v519 = vpop.f32.mrf.mxu0
      %v520 = vadd.f32 0.0, %v519
      %521 = vmatmul.f32.gmra.mxu0 %v297
      %v522 = vpop.f32.mrf.mxu0
      %v523 = vadd.f32 0.0, %v522
      %524 = vmatmul.f32.gmra.mxu0 %v300
      %v525 = vpop.f32.mrf.mxu0
      %v526 = vadd.f32 0.0, %v525
      %527 = vmatmul.f32.gmra.mxu0 %v303
      %v528 = vpop.f32.mrf.mxu0
      %v529 = vadd.f32 0.0, %v528
      %530 = vmatmul.f32.gmra.mxu0 %v306
      %v531 = vpop.f32.mrf.mxu0
      %v532 = vadd.f32 0.0, %v531
      %533 = vmatmul.f32.gmra.mxu0 %v309
      %v534 = vpop.f32.mrf.mxu0
      %v535 = vadd.f32 0.0, %v534
      %536 = vmatmul.f32.gmra.mxu0 %v312
      %v537 = vpop.f32.mrf.mxu0
      %v538 = vadd.f32 0.0, %v537
      %539 = vmatmul.f32.gmra.mxu0 %v315
      %v540 = vpop.f32.mrf.mxu0
      %v541 = vadd.f32 0.0, %v540
      %542 = vmatmul.f32.gmra.mxu0 %v318
      %v543 = vpop.f32.mrf.mxu0
      %v544 = vadd.f32 0.0, %v543
      %545 = vmatmul.f32.gmra.mxu0 %v321
      %v546 = vpop.f32.mrf.mxu0
      %v547 = vadd.f32 0.0, %v546
      %548 = vmatmul.f32.gmra.mxu0 %v324
      %v549 = vpop.f32.mrf.mxu0
      %v550 = vadd.f32 0.0, %v549
      %551 = vmatmul.f32.gmra.mxu0 %v327
      %v552 = vpop.f32.mrf.mxu0
      %v553 = vadd.f32 0.0, %v552
      %554 = vmatmul.f32.gmra.mxu0 %v330
      %v555 = vpop.f32.mrf.mxu0
      %v556 = vadd.f32 0.0, %v555
      %557 = vmatmul.f32.gmra.mxu0 %v333
      %v558 = vpop.f32.mrf.mxu0
      %v559 = vadd.f32 0.0, %v558
      %560 = vmatmul.f32.gmra.mxu0 %v336
      %v561 = vpop.f32.mrf.mxu0
      %v562 = vadd.f32 0.0, %v561
      %563 = vmatmul.f32.gmra.mxu0 %v339
      %v564 = vpop.f32.mrf.mxu0
      %v565 = vadd.f32 0.0, %v564
      %566 = vmatmul.f32.gmra.mxu0 %v342
      %v567 = vpop.f32.mrf.mxu0
      %v568 = vadd.f32 0.0, %v567
      %569 = vmatmul.f32.gmra.mxu0 %v345
      %v570 = vpop.f32.mrf.mxu0
      %v571 = vadd.f32 0.0, %v570
      %572 = vmatmul.f32.gmra.mxu0 %v348
      %v573 = vpop.f32.mrf.mxu0
      %v574 = vadd.f32 0.0, %v573
      %575 = vmatmul.f32.gmra.mxu0 %v351
      %v576 = vpop.f32.mrf.mxu0
      %v577 = vadd.f32 0.0, %v576
      %578 = vmatmul.f32.gmra.mxu0 %v354
      %v579 = vpop.f32.mrf.mxu0
      %v580 = vadd.f32 0.0, %v579
      %581 = vmatmul.f32.gmra.mxu0 %v357
      %v582 = vpop.f32.mrf.mxu0
      %v583 = vadd.f32 0.0, %v582
      %584 = vmatmul.f32.gmra.mxu0 %v360
      %v585 = vpop.f32.mrf.mxu0
      %v586 = vadd.f32 0.0, %v585
      %587 = vmatmul.f32.gmra.mxu0 %v363
      %v588 = vpop.f32.mrf.mxu0
      %v589 = vadd.f32 0.0, %v588
      %590 = vmatmul.f32.gmra.mxu0 %v366
      %v591 = vpop.f32.mrf.mxu0
      %v592 = vadd.f32 0.0, %v591
      %593 = vmatmul.f32.gmra.mxu0 %v369
      %v594 = vpop.f32.mrf.mxu0
      %v595 = vadd.f32 0.0, %v594
      %596 = vmatmul.f32.gmra.mxu0 %v372
      %v597 = vpop.f32.mrf.mxu0
      %v598 = vadd.f32 0.0, %v597
      %599 = vmatmul.f32.gmra.mxu0 %v375
      %v600 = vpop.f32.mrf.mxu0
      %v601 = vadd.f32 0.0, %v600
      %602 = vmatmul.f32.gmra.mxu0 %v378
      %v603 = vpop.f32.mrf.mxu0
      %v604 = vadd.f32 0.0, %v603
      %605 = vmatmul.f32.gmra.mxu0 %v381
      %v606 = vpop.f32.mrf.mxu0
      %v607 = vadd.f32 0.0, %v606
      %608 = vmatmul.f32.gmra.mxu0 %v384
      %v609 = vpop.f32.mrf.mxu0
      %v610 = vadd.f32 0.0, %v609
      %611 = vmatmul.f32.gmra.mxu0 %v387
      %v612 = vpop.f32.mrf.mxu0
      %v613 = vadd.f32 0.0, %v612
      %614 = vdwg.mxu0
      %v615 = vld [vmem:[%s2] sm:$0x3]
      %v617 = vperm.slane %v615, 0
      %v618 = vperm.slane %v615, 1
      %v621 = vadd.f32 %v407, %v617
      %v622 = vadd.f32 %v520, %v618
      %v623 = vadd.f32 %v410, %v617
      %v624 = vadd.f32 %v523, %v618
      %v625 = vadd.f32 %v413, %v617
      %v626 = vadd.f32 %v526, %v618
      %v627 = vadd.f32 %v416, %v617
      %v628 = vadd.f32 %v529, %v618
      %v629 = vadd.f32 %v419, %v617
      %v630 = vadd.f32 %v532, %v618
      %v631 = vadd.f32 %v422, %v617
      %v632 = vadd.f32 %v535, %v618
      %v633 = vadd.f32 %v425, %v617
      %v634 = vadd.f32 %v538, %v618
      %v635 = vadd.f32 %v428, %v617
      %v636 = vadd.f32 %v541, %v618
      %v637 = vadd.f32 %v431, %v617
      %v638 = vadd.f32 %v544, %v618
      %v639 = vadd.f32 %v434, %v617
      %v640 = vadd.f32 %v547, %v618
      %v641 = vadd.f32 %v437, %v617
      %v642 = vadd.f32 %v550, %v618
      %v643 = vadd.f32 %v440, %v617
      %v644 = vadd.f32 %v553, %v618
      %v645 = vadd.f32 %v443, %v617
      %v646 = vadd.f32 %v556, %v618
      %v647 = vadd.f32 %v446, %v617
      %v648 = vadd.f32 %v559, %v618
      %v649 = vadd.f32 %v449, %v617
      %v650 = vadd.f32 %v562, %v618
      %v651 = vadd.f32 %v452, %v617
      %v652 = vadd.f32 %v565, %v618
      %v653 = vadd.f32 %v455, %v617
      %v654 = vadd.f32 %v568, %v618
      %v655 = vadd.f32 %v458, %v617
      %v656 = vadd.f32 %v571, %v618
      %v657 = vadd.f32 %v461, %v617
      %v658 = vadd.f32 %v574, %v618
      %v659 = vadd.f32 %v464, %v617
      %v660 = vadd.f32 %v577, %v618
      %v661 = vadd.f32 %v467, %v617
      %v662 = vadd.f32 %v580, %v618
      %v663 = vadd.f32 %v470, %v617
      %v664 = vadd.f32 %v583, %v618
      %v665 = vadd.f32 %v473, %v617
      %v666 = vadd.f32 %v586, %v618
      %v667 = vadd.f32 %v476, %v617
      %v668 = vadd.f32 %v589, %v618
      %v669 = vadd.f32 %v479, %v617
      %v670 = vadd.f32 %v592, %v618
      %v671 = vadd.f32 %v482, %v617
      %v672 = vadd.f32 %v595, %v618
      %v673 = vadd.f32 %v485, %v617
      %v674 = vadd.f32 %v598, %v618
      %v675 = vadd.f32 %v488, %v617
      %v676 = vadd.f32 %v601, %v618
      %v677 = vadd.f32 %v491, %v617
      %v678 = vadd.f32 %v604, %v618
      %v679 = vadd.f32 %v494, %v617
      %v680 = vadd.f32 %v607, %v618
      %v681 = vadd.f32 %v497, %v617
      %v682 = vadd.f32 %v610, %v618
      %v683 = vadd.f32 %v500, %v617
      %v684 = vadd.f32 %v613, %v618
      %v685 = vmax.f32 %v621, 0.0
      %v686 = vmax.f32 %v622, 0.0
      %v687 = vmax.f32 %v623, 0.0
      %v688 = vmax.f32 %v624, 0.0
      %v689 = vmax.f32 %v625, 0.0
      %v690 = vmax.f32 %v626, 0.0
      %v691 = vmax.f32 %v627, 0.0
      %v692 = vmax.f32 %v628, 0.0
      %v693 = vmax.f32 %v629, 0.0
      %v694 = vmax.f32 %v630, 0.0
      %v695 = vmax.f32 %v631, 0.0
      %v696 = vmax.f32 %v632, 0.0
      %v697 = vmax.f32 %v633, 0.0
      %v698 = vmax.f32 %v634, 0.0
      %v699 = vmax.f32 %v635, 0.0
      %v700 = vmax.f32 %v636, 0.0
      %v701 = vmax.f32 %v637, 0.0
      %v702 = vmax.f32 %v638, 0.0
      %v703 = vmax.f32 %v639, 0.0
      %v704 = vmax.f32 %v640, 0.0
      %v705 = vmax.f32 %v641, 0.0
      %v706 = vmax.f32 %v642, 0.0
      %v707 = vmax.f32 %v643, 0.0
      %v708 = vmax.f32 %v644, 0.0
      %v709 = vmax.f32 %v645, 0.0
      %v710 = vmax.f32 %v646, 0.0
      %v711 = vmax.f32 %v647, 0.0
      %v712 = vmax.f32 %v648, 0.0
      %v713 = vmax.f32 %v649, 0.0
      %v714 = vmax.f32 %v650, 0.0
      %v715 = vmax.f32 %v651, 0.0
      %v716 = vmax.f32 %v652, 0.0
      %v717 = vmax.f32 %v653, 0.0
      %v718 = vmax.f32 %v654, 0.0
      %v719 = vmax.f32 %v655, 0.0
      %v720 = vmax.f32 %v656, 0.0
      %v721 = vmax.f32 %v657, 0.0
      %v722 = vmax.f32 %v658, 0.0
      %v723 = vmax.f32 %v659, 0.0
      %v724 = vmax.f32 %v660, 0.0
      %v725 = vmax.f32 %v661, 0.0
      %v726 = vmax.f32 %v662, 0.0
      %v727 = vmax.f32 %v663, 0.0
      %v728 = vmax.f32 %v664, 0.0
      %v729 = vmax.f32 %v665, 0.0
      %v730 = vmax.f32 %v666, 0.0
      %v731 = vmax.f32 %v667, 0.0
      %v732 = vmax.f32 %v668, 0.0
      %v733 = vmax.f32 %v669, 0.0
      %v734 = vmax.f32 %v670, 0.0
      %v735 = vmax.f32 %v671, 0.0
      %v736 = vmax.f32 %v672, 0.0
      %v737 = vmax.f32 %v673, 0.0
      %v738 = vmax.f32 %v674, 0.0
      %v739 = vmax.f32 %v675, 0.0
      %v740 = vmax.f32 %v676, 0.0
      %v741 = vmax.f32 %v677, 0.0
      %v742 = vmax.f32 %v678, 0.0
      %v743 = vmax.f32 %v679, 0.0
      %v744 = vmax.f32 %v680, 0.0
      %v745 = vmax.f32 %v681, 0.0
      %v746 = vmax.f32 %v682, 0.0
      %v747 = vmax.f32 %v683, 0.0
      %v748 = vmax.f32 %v684, 0.0
      %v749 = vld [vmem:[%s3] sm:$0x3]
      %v751 = vperm.slane %v749, 0
      %v752 = vperm.slane %v749, 1
      %v755 = vsub.f32 %v751, %v407
      %v756 = vsub.f32 %v752, %v520
      %v757 = vsub.f32 %v751, %v410
      %v758 = vsub.f32 %v752, %v523
      %v759 = vsub.f32 %v751, %v413
      %v760 = vsub.f32 %v752, %v526
      %v761 = vsub.f32 %v751, %v416
      %v762 = vsub.f32 %v752, %v529
      %v763 = vsub.f32 %v751, %v419
      %v764 = vsub.f32 %v752, %v532
      %v765 = vsub.f32 %v751, %v422
      %v766 = vsub.f32 %v752, %v535
      %v767 = vsub.f32 %v751, %v425
      %v768 = vsub.f32 %v752, %v538
      %v769 = vsub.f32 %v751, %v428
      %v770 = vsub.f32 %v752, %v541
      %v771 = vsub.f32 %v751, %v431
      %v772 = vsub.f32 %v752, %v544
      %v773 = vsub.f32 %v751, %v434
      %v774 = vsub.f32 %v752, %v547
      %v775 = vsub.f32 %v751, %v437
      %v776 = vsub.f32 %v752, %v550
      %v777 = vsub.f32 %v751, %v440
      %v778 = vsub.f32 %v752, %v553
      %v779 = vsub.f32 %v751, %v443
      %v780 = vsub.f32 %v752, %v556
      %v781 = vsub.f32 %v751, %v446
      %v782 = vsub.f32 %v752, %v559
      %v783 = vsub.f32 %v751, %v449
      %v784 = vsub.f32 %v752, %v562
      %v785 = vsub.f32 %v751, %v452
      %v786 = vsub.f32 %v752, %v565
      %v787 = vsub.f32 %v751, %v455
      %v788 = vsub.f32 %v752, %v568
      %v789 = vsub.f32 %v751, %v458
      %v790 = vsub.f32 %v752, %v571
      %v791 = vsub.f32 %v751, %v461
      %v792 = vsub.f32 %v752, %v574
      %v793 = vsub.f32 %v751, %v464
      %v794 = vsub.f32 %v752, %v577
      %v795 = vsub.f32 %v751, %v467
      %v796 = vsub.f32 %v752, %v580
      %v797 = vsub.f32 %v751, %v470
      %v798 = vsub.f32 %v752, %v583
      %v799 = vsub.f32 %v751, %v473
      %v800 = vsub.f32 %v752, %v586
      %v801 = vsub.f32 %v751, %v476
      %v802 = vsub.f32 %v752, %v589
      %v803 = vsub.f32 %v751, %v479
      %v804 = vsub.f32 %v752, %v592
      %v805 = vsub.f32 %v751, %v482
      %v806 = vsub.f32 %v752, %v595
      %v807 = vsub.f32 %v751, %v485
      %v808 = vsub.f32 %v752, %v598
      %v809 = vsub.f32 %v751, %v488
      %v810 = vsub.f32 %v752, %v601
      %v811 = vsub.f32 %v751, %v491
      %v812 = vsub.f32 %v752, %v604
      %v813 = vsub.f32 %v751, %v494
      %v814 = vsub.f32 %v752, %v607
      %v815 = vsub.f32 %v751, %v497
      %v816 = vsub.f32 %v752, %v610
      %v817 = vsub.f32 %v751, %v500
      %v818 = vsub.f32 %v752, %v613
      %v819 = vmax.f32 %v755, 0.0
      %v820 = vmax.f32 %v756, 0.0
      %v821 = vmax.f32 %v757, 0.0
      %v822 = vmax.f32 %v758, 0.0
      %v823 = vmax.f32 %v759, 0.0
      %v824 = vmax.f32 %v760, 0.0
      %v825 = vmax.f32 %v761, 0.0
      %v826 = vmax.f32 %v762, 0.0
      %v827 = vmax.f32 %v763, 0.0
      %v828 = vmax.f32 %v764, 0.0
      %v829 = vmax.f32 %v765, 0.0
      %v830 = vmax.f32 %v766, 0.0
      %v831 = vmax.f32 %v767, 0.0
      %v832 = vmax.f32 %v768, 0.0
      %v833 = vmax.f32 %v769, 0.0
      %v834 = vmax.f32 %v770, 0.0
      %v835 = vmax.f32 %v771, 0.0
      %v836 = vmax.f32 %v772, 0.0
      %v837 = vmax.f32 %v773, 0.0
      %v838 = vmax.f32 %v774, 0.0
      %v839 = vmax.f32 %v775, 0.0
      %v840 = vmax.f32 %v776, 0.0
      %v841 = vmax.f32 %v777, 0.0
      %v842 = vmax.f32 %v778, 0.0
      %v843 = vmax.f32 %v779, 0.0
      %v844 = vmax.f32 %v780, 0.0
      %v845 = vmax.f32 %v781, 0.0
      %v846 = vmax.f32 %v782, 0.0
      %v847 = vmax.f32 %v783, 0.0
      %v848 = vmax.f32 %v784, 0.0
      %v849 = vmax.f32 %v785, 0.0
      %v850 = vmax.f32 %v786, 0.0
      %v851 = vmax.f32 %v787, 0.0
      %v852 = vmax.f32 %v788, 0.0
      %v853 = vmax.f32 %v789, 0.0
      %v854 = vmax.f32 %v790, 0.0
      %v855 = vmax.f32 %v791, 0.0
      %v856 = vmax.f32 %v792, 0.0
      %v857 = vmax.f32 %v793, 0.0
      %v858 = vmax.f32 %v794, 0.0
      %v859 = vmax.f32 %v795, 0.0
      %v860 = vmax.f32 %v796, 0.0
      %v861 = vmax.f32 %v797, 0.0
      %v862 = vmax.f32 %v798, 0.0
      %v863 = vmax.f32 %v799, 0.0
      %v864 = vmax.f32 %v800, 0.0
      %v865 = vmax.f32 %v801, 0.0
      %v866 = vmax.f32 %v802, 0.0
      %v867 = vmax.f32 %v803, 0.0
      %v868 = vmax.f32 %v804, 0.0
      %v869 = vmax.f32 %v805, 0.0
      %v870 = vmax.f32 %v806, 0.0
      %v871 = vmax.f32 %v807, 0.0
      %v872 = vmax.f32 %v808, 0.0
      %v873 = vmax.f32 %v809, 0.0
      %v874 = vmax.f32 %v810, 0.0
      %v875 = vmax.f32 %v811, 0.0
      %v876 = vmax.f32 %v812, 0.0
      %v877 = vmax.f32 %v813, 0.0
      %v878 = vmax.f32 %v814, 0.0
      %v879 = vmax.f32 %v815, 0.0
      %v880 = vmax.f32 %v816, 0.0
      %v881 = vmax.f32 %v817, 0.0
      %v882 = vmax.f32 %v818, 0.0
      %v883 = vadd.f32 %v685, %v687
      %v884 = vadd.f32 %v883, %v689
      %v885 = vadd.f32 %v884, %v691
      %v886 = vadd.f32 %v885, %v693
      %v887 = vadd.f32 %v886, %v695
      %v888 = vadd.f32 %v887, %v697
      %v889 = vadd.f32 %v888, %v699
      %v890 = vadd.f32 %v889, %v701
      %v891 = vadd.f32 %v890, %v703
      %v892 = vadd.f32 %v891, %v705
      %v893 = vadd.f32 %v892, %v707
      %v894 = vadd.f32 %v893, %v709
      %v895 = vadd.f32 %v894, %v711
      %v896 = vadd.f32 %v895, %v713
      %v897 = vadd.f32 %v896, %v715
      %v898 = vadd.f32 %v897, %v717
      %v899 = vadd.f32 %v898, %v719
      %v900 = vadd.f32 %v899, %v721
      %v901 = vadd.f32 %v900, %v723
      %v902 = vadd.f32 %v901, %v725
      %v903 = vadd.f32 %v902, %v727
      %v904 = vadd.f32 %v903, %v729
      %v905 = vadd.f32 %v904, %v731
      %v906 = vadd.f32 %v905, %v733
      %v907 = vadd.f32 %v906, %v735
      %v908 = vadd.f32 %v907, %v737
      %v909 = vadd.f32 %v908, %v739
      %v910 = vadd.f32 %v909, %v741
      %v911 = vadd.f32 %v910, %v743
      %v912 = vadd.f32 %v911, %v745
      %v913 = vadd.f32 %v912, %v747
      %v914 = vrot.slane %v913, 4
      %v915 = vadd.f32 %v913, %v914
      %v916 = vrot.slane %v915, 2
      %v917 = vadd.f32 %v915, %v916
      %v918 = vrot.slane %v917, 1
      %v919 = vadd.f32 %v917, %v918
      %v920 = vadd.f32 %v686, %v688
      %v921 = vadd.f32 %v920, %v690
      %v922 = vadd.f32 %v921, %v692
      %v923 = vadd.f32 %v922, %v694
      %v924 = vadd.f32 %v923, %v696
      %v925 = vadd.f32 %v924, %v698
      %v926 = vadd.f32 %v925, %v700
      %v927 = vadd.f32 %v926, %v702
      %v928 = vadd.f32 %v927, %v704
      %v929 = vadd.f32 %v928, %v706
      %v930 = vadd.f32 %v929, %v708
      %v931 = vadd.f32 %v930, %v710
      %v932 = vadd.f32 %v931, %v712
      %v933 = vadd.f32 %v932, %v714
      %v934 = vadd.f32 %v933, %v716
      %v935 = vadd.f32 %v934, %v718
      %v936 = vadd.f32 %v935, %v720
      %v937 = vadd.f32 %v936, %v722
      %v938 = vadd.f32 %v937, %v724
      %v939 = vadd.f32 %v938, %v726
      %v940 = vadd.f32 %v939, %v728
      %v941 = vadd.f32 %v940, %v730
      %v942 = vadd.f32 %v941, %v732
      %v943 = vadd.f32 %v942, %v734
      %v944 = vadd.f32 %v943, %v736
      %v945 = vadd.f32 %v944, %v738
      %v946 = vadd.f32 %v945, %v740
      %v947 = vadd.f32 %v946, %v742
      %v948 = vadd.f32 %v947, %v744
      %v949 = vadd.f32 %v948, %v746
      %v950 = vadd.f32 %v949, %v748
      %v951 = vrot.slane %v950, 4
      %v952 = vadd.f32 %v950, %v951
      %v953 = vrot.slane %v952, 2
      %v954 = vadd.f32 %v952, %v953
      %v955 = vrot.slane %v954, 1
      %v956 = vadd.f32 %v954, %v955
      %v957 = vadd.f32 %v819, %v821
      %v958 = vadd.f32 %v957, %v823
      %v959 = vadd.f32 %v958, %v825
      %v960 = vadd.f32 %v959, %v827
      %v961 = vadd.f32 %v960, %v829
      %v962 = vadd.f32 %v961, %v831
      %v963 = vadd.f32 %v962, %v833
      %v964 = vadd.f32 %v963, %v835
      %v965 = vadd.f32 %v964, %v837
      %v966 = vadd.f32 %v965, %v839
      %v967 = vadd.f32 %v966, %v841
      %v968 = vadd.f32 %v967, %v843
      %v969 = vadd.f32 %v968, %v845
      %v970 = vadd.f32 %v969, %v847
      %v971 = vadd.f32 %v970, %v849
      %v972 = vadd.f32 %v971, %v851
      %v973 = vadd.f32 %v972, %v853
      %v974 = vadd.f32 %v973, %v855
      %v975 = vadd.f32 %v974, %v857
      %v976 = vadd.f32 %v975, %v859
      %v977 = vadd.f32 %v976, %v861
      %v978 = vadd.f32 %v977, %v863
      %v979 = vadd.f32 %v978, %v865
      %v980 = vadd.f32 %v979, %v867
      %v981 = vadd.f32 %v980, %v869
      %v982 = vadd.f32 %v981, %v871
      %v983 = vadd.f32 %v982, %v873
      %v984 = vadd.f32 %v983, %v875
      %v985 = vadd.f32 %v984, %v877
      %v986 = vadd.f32 %v985, %v879
      %v987 = vadd.f32 %v986, %v881
      %v988 = vrot.slane %v987, 4
      %v989 = vadd.f32 %v987, %v988
      %v990 = vrot.slane %v989, 2
      %v991 = vadd.f32 %v989, %v990
      %v992 = vrot.slane %v991, 1
      %v993 = vadd.f32 %v991, %v992
      %v994 = vadd.f32 %v820, %v822
      %v995 = vadd.f32 %v994, %v824
      %v996 = vadd.f32 %v995, %v826
      %v997 = vadd.f32 %v996, %v828
      %v998 = vadd.f32 %v997, %v830
      %v999 = vadd.f32 %v998, %v832
      %v1000 = vadd.f32 %v999, %v834
      %v1001 = vadd.f32 %v1000, %v836
      %v1002 = vadd.f32 %v1001, %v838
      %v1003 = vadd.f32 %v1002, %v840
      %v1004 = vadd.f32 %v1003, %v842
      %v1005 = vadd.f32 %v1004, %v844
      %v1006 = vadd.f32 %v1005, %v846
      %v1007 = vadd.f32 %v1006, %v848
      %v1008 = vadd.f32 %v1007, %v850
      %v1009 = vadd.f32 %v1008, %v852
      %v1010 = vadd.f32 %v1009, %v854
      %v1011 = vadd.f32 %v1010, %v856
      %v1012 = vadd.f32 %v1011, %v858
      %v1013 = vadd.f32 %v1012, %v860
      %v1014 = vadd.f32 %v1013, %v862
      %v1015 = vadd.f32 %v1014, %v864
      %v1016 = vadd.f32 %v1015, %v866
      %v1017 = vadd.f32 %v1016, %v868
      %v1018 = vadd.f32 %v1017, %v870
      %v1019 = vadd.f32 %v1018, %v872
      %v1020 = vadd.f32 %v1019, %v874
      %v1021 = vadd.f32 %v1020, %v876
      %v1022 = vadd.f32 %v1021, %v878
      %v1023 = vadd.f32 %v1022, %v880
      %v1024 = vadd.f32 %v1023, %v882
      %v1025 = vrot.slane %v1024, 4
      %v1026 = vadd.f32 %v1024, %v1025
      %v1027 = vrot.slane %v1026, 2
      %v1028 = vadd.f32 %v1026, %v1027
      %v1029 = vrot.slane %v1028, 1
      %v1030 = vadd.f32 %v1028, %v1029
      %vm1031 = vcmask 1040384
      %v1032 = vsel %vm1031, %v919, %v993
      %vm1033 = vcmask 1041408
      %v1034 = vsel %vm1033, %v1032, %v956
      %vm1035 = vcmask 1042432
      %v1036 = vsel %vm1035, %v1034, %v1030
      %p1037 = scmp.eq.s32.totalorder %s20, 0
      // Predicated region
      $region37: #{net_forward.2} parent=35 // pred_check
        %p1038 = pneg %p1037
      $region38: #{net_forward.2} parent=35 // pred_check_branch
        %1040 = sbr.rel (%p1038) target = $region40
      $region39: #{net_forward.2} parent=35 // pred_region
        %1041 = vst [vmem:[%s223] sm:$0xf] %v1036
      $region40: #{net_forward.2} parent=35 // pred_fallthru
        _
      %p1042 = scmp.ne.s32.totalorder %s20, 0
      // Predicated region
      $region41: #{net_forward.2} parent=35 // pred_check
        %p1043 = pneg %p1042
      $region42: #{net_forward.2} parent=35 // pred_check_branch
        %1045 = sbr.rel (%p1043) target = $region44
      $region43: #{net_forward.2} parent=35 // pred_region
        %v1046 = vld [vmem:[%s223] sm:$0xf]
        %v1047 = vadd.f32 %v1046, %v1036
        %1048 = vst [vmem:[%s223] sm:$0xf] %v1047
      $region44: #{net_forward.2} parent=35 // pred_fallthru
        _
      // Predicated region
      $region45: #{net_forward.2} parent=35 // pred_check
        %p1049 = pneg %p1037
      $region46: #{net_forward.2} parent=35 // pred_check_branch
        %1051 = sbr.rel (%p1049) target = $region48
      $region47: #{net_forward.2} parent=35 // pred_region
        %v1052 = vld [vmem:[%s223] sm:$0xf]
        %v1053 = vmul.f32 %v1052, 0.00390625
        %1054 = vst [vmem:[%s223] sm:$0xf] %v1053
      $region48: #{net_forward.2} parent=35 // pred_fallthru
        _
      %p1055 = scmp.lt.s32.totalorder %s19, 1
      %s1056 = scalar_select %p1055, %s19, 1
      %s1057 = smul.addr %s1056, 4
      %s1058 = scalar_lea.vmem %s4, %s1057
      // Predicated region
      $region49: #{net_forward.2} parent=35 // pred_check
        %p1059 = pneg %p136
      $region50: #{net_forward.2} parent=35 // pred_check_branch
        %1061 = sbr.rel (%p1059) target = $region52
      $region51: #{net_forward.2} parent=35 // pred_region
        _
      $region52: #{net_forward.2} parent=35 // pred_fallthru
        _
    $region36: #{net_forward.2} parent=5 // pred_fallthru
      _
    %p1062 = scmp.le.s32.totalorder 2, %s10
    // Predicated region
    $region53: #{net_forward.2} parent=5 // pred_check
      %p1063 = pneg %p1062
    $region54: #{net_forward.2} parent=5 // pred_check_branch
      %1065 = sbr.rel (%p1063) target = $region56
    $region55: #{net_forward.2} parent=5 // pred_region
      %s1066 = ssub.s32 %s10, 2
      // Predicated region
      $region57: #{net_forward.2} parent=55 // pred_check
        %p1067 = pneg %p142
      $region58: #{net_forward.2} parent=55 // pred_check_branch
        %1069 = sbr.rel (%p1067) target = $region60
      $region59: #{net_forward.2} parent=55 // pred_region
        %p1070 = scmp.lt.s32.totalorder %s21, 1
        %s1071 = scalar_select %p1070, %s21, 1
        %s1072 = smul.addr %s1071, 4
        %s1073 = scalar_lea.vmem %s4, %s1072
      $region60: #{net_forward.2} parent=55 // pred_fallthru
        _
    $region56: #{net_forward.2} parent=5 // pred_fallthru
      _
  $region6: #{net_forward.2} parent=0 // loop_footer
    %s14 = sadd.s32 1, %s10
  $region7: #{net_forward.2} parent=0 // loop_footer_branch
    %9 = sbr.rel target = $region3
  $region8: #{net_forward.2} parent=0 // loop_exit
    _

// kernel: net_forward.3
$region0: #{net_forward.3}
  #allocation0 [shape = 'u32[]', space=smem, size = 0x4, offset = 0x4, fixed_abs, tag = 'smem constant byte address 0x4 - core index']
  #allocation1 [shape = 'u32[72,128]{1,0:T(1,128)}', space=vmem, size = 0x9000, scoped, tag = 'internal scratch']
  #allocation2 [shape = 'f32[1,1]{1,0:T(1,128)S(1)}', space=vmem, size = 0x200, scoped, tag = 'scoped memory for net_forward.3']
  %s0 = inlined_call_operand.vmem [shape: f32[2,4,128], index: 0, kind: input, shape index: {}]
  %s1 = inlined_call_operand.vmem [shape: f32[256,256], index: 1, kind: input, shape index: {}]
  %s2 = inlined_call_operand.vmem [shape: f32[1,256], index: 2, kind: input, shape index: {}]
  %s3 = inlined_call_operand.hbm [shape: f32[256,256], index: 3, kind: input, shape index: {}]
  %s4 = inlined_call_operand.vmem [shape: f32[1,256], index: 4, kind: input, shape index: {}]
  %s5 = inlined_call_operand.vmem [shape: f32[256,1], index: 5, kind: input, shape index: {}]
  %s6 = inlined_call_operand.<no memory space> [shape: f32[1,1], index: 6, kind: input, shape index: {}]
  %s7 = inlined_call_operand.vmem [shape: f32[6,1], index: 7, kind: output, shape index: {}]
  %s8 = sld [smem:[#allocation0]]
  $region42: #{net_forward.3} parent=0
    _
  %s10 = ssub.s32 1, %s8
  %s11 = scalar_select 0, %s10, %s8
  %v12 = vstv %s6
  %13 = vst [vmem:[#allocation2] sm:$0x1] %v12
  $region1: #{net_forward.3} parent=0
    #allocation3 [shape = 'u8[262144]{0}', space=vmem, size = 0x40000, scoped, tag = 'input window, operand 3, single buffered']
    #allocation4 [shape = 's32[1]{0}', space=sflag, size = 0x4, scoped, tag = 'scoped memory for net_forward.3']
    %14 = vsyncpa [#allocation4], 0
    // Predicated region
    $region2: #{net_forward.3} parent=1 // pred_check
      _
    $region3: #{net_forward.3} parent=1 // pred_check_branch
      %16 = sbr.rel (0) target = $region5
    $region4: #{net_forward.3} parent=1 // pred_region
      _
    $region5: #{net_forward.3} parent=1 // pred_fallthru
      _
    // Predicated region
    $region6: #{net_forward.3} parent=1 // pred_check
      _
    $region7: #{net_forward.3} parent=1 // pred_check_branch
      %18 = sbr.rel (0) target = $region9
    $region8: #{net_forward.3} parent=1 // pred_region
      _
    $region9: #{net_forward.3} parent=1 // pred_fallthru
      _
    // Predicated region
    $region10: #{net_forward.3} parent=1 // pred_check
      _
    $region11: #{net_forward.3} parent=1 // pred_check_branch
      %20 = sbr.rel (0) target = $region13
    $region12: #{net_forward.3} parent=1 // pred_region
      _
    $region13: #{net_forward.3} parent=1 // pred_fallthru
      _
    // Predicated region
    $region14: #{net_forward.3} parent=1 // pred_check
      _
    $region15: #{net_forward.3} parent=1 // pred_check_branch
      %22 = sbr.rel (0) target = $region17
    $region16: #{net_forward.3} parent=1 // pred_region
      %24 = vsyncadd [#allocation4], 0
      %s25 = sshll.u32 %s3, 4
      %s26 = int_to_ptr.hbm [resolvable:$true] %s25
      %s27 = sshll.u32 [#allocation3], 4
      %s28 = int_to_ptr.vmem [resolvable:$true] %s27
      %33 = dma.hbm_to_vmem [thread:$0]  %s26, 8192, %s28, [#allocation4], 256, 256, 16
    $region17: #{net_forward.3} parent=1 // pred_fallthru
      _
    // Predicated region
    $region18: #{net_forward.3} parent=1 // pred_check
      _
    $region19: #{net_forward.3} parent=1 // pred_check_branch
      %35 = sbr.rel (0) target = $region21
    $region20: #{net_forward.3} parent=1 // pred_region
      _
    $region21: #{net_forward.3} parent=1 // pred_fallthru
      _
    // Predicated region
    $region22: #{net_forward.3} parent=1 // pred_check
      _
    $region23: #{net_forward.3} parent=1 // pred_check_branch
      %37 = sbr.rel (0) target = $region25
    $region24: #{net_forward.3} parent=1 // pred_region
      _
    $region25: #{net_forward.3} parent=1 // pred_fallthru
      _
    // Predicated region
    $region26: #{net_forward.3} parent=1 // pred_check
      _
    $region27: #{net_forward.3} parent=1 // pred_check_branch
      %39 = sbr.rel (0) target = $region29
    $region28: #{net_forward.3} parent=1 // pred_region
      _
    $region29: #{net_forward.3} parent=1 // pred_fallthru
      _
    // Predicated region
    $region30: #{net_forward.3} parent=1 // pred_check
      _
    $region31: #{net_forward.3} parent=1 // pred_check_branch
      %41 = sbr.rel (0) target = $region33
    $region32: #{net_forward.3} parent=1 // pred_region
      %43 = dma.done [#allocation4], 8192
    $region33: #{net_forward.3} parent=1 // pred_fallthru
      _
    %v44 = vld [vmem:[%s0] sm:$0xf]
    %v45 = vld [vmem:[%s0 + $0x4] sm:$0xf]
    %v48 = vrot.slane %v45, 7
    %vm49 = vcmask 1041409
    %v50 = vsel %vm49, %v48, %v44
    %v52 = vrot.slane %v44, 7
    %v53 = vrot.slane %v45, 6
    %vm54 = vcmask 1043459
    %v55 = vsel %vm54, %v53, %v52
    %v57 = vrot.slane %v44, 6
    %v58 = vrot.slane %v45, 5
    %vm59 = vcmask 1045509
    %v60 = vsel %vm59, %v58, %v57
    %v62 = vrot.slane %v44, 5
    %v63 = vrot.slane %v45, 4
    %vm64 = vcmask 1047559
    %v65 = vsel %vm64, %v63, %v62
    %vm67 = vcmask 1041408
    %v68 = vsel %vm67, %v50, %v55
    %vm69 = vcmask 1043456
    %v70 = vsel %vm69, %v68, %v60
    %vm71 = vcmask 1045504
    %v72 = vsel %vm71, %v70, %v65
    %v73 = vld [vmem:[%s1] sm:$0xff]
    %v74 = vld [vmem:[%s1 + $0x8] sm:$0xff]
    %v75 = vld [vmem:[%s1 + $0x10] sm:$0xff]
    %v76 = vld [vmem:[%s1 + $0x18] sm:$0xff]
    %v77 = vld [vmem:[%s1 + $0x20] sm:$0xff]
    %v78 = vld [vmem:[%s1 + $0x28] sm:$0xff]
    %v79 = vld [vmem:[%s1 + $0x30] sm:$0xff]
    %v80 = vld [vmem:[%s1 + $0x38] sm:$0xff]
    %v81 = vld [vmem:[%s1 + $0x40] sm:$0xff]
    %v82 = vld [vmem:[%s1 + $0x48] sm:$0xff]
    %v83 = vld [vmem:[%s1 + $0x50] sm:$0xff]
    %v84 = vld [vmem:[%s1 + $0x58] sm:$0xff]
    %v85 = vld [vmem:[%s1 + $0x60] sm:$0xff]
    %v86 = vld [vmem:[%s1 + $0x68] sm:$0xff]
    %v87 = vld [vmem:[%s1 + $0x70] sm:$0xff]
    %v88 = vld [vmem:[%s1 + $0x78] sm:$0xff]
    %v89 = vld [vmem:[%s1 + $0x80] sm:$0xff]
    %v90 = vld [vmem:[%s1 + $0x88] sm:$0xff]
    %v91 = vld [vmem:[%s1 + $0x90] sm:$0xff]
    %v92 = vld [vmem:[%s1 + $0x98] sm:$0xff]
    %v93 = vld [vmem:[%s1 + $0xa0] sm:$0xff]
    %v94 = vld [vmem:[%s1 + $0xa8] sm:$0xff]
    %v95 = vld [vmem:[%s1 + $0xb0] sm:$0xff]
    %v96 = vld [vmem:[%s1 + $0xb8] sm:$0xff]
    %v97 = vld [vmem:[%s1 + $0xc0] sm:$0xff]
    %v98 = vld [vmem:[%s1 + $0xc8] sm:$0xff]
    %v99 = vld [vmem:[%s1 + $0xd0] sm:$0xff]
    %v100 = vld [vmem:[%s1 + $0xd8] sm:$0xff]
    %v101 = vld [vmem:[%s1 + $0xe0] sm:$0xff]
    %v102 = vld [vmem:[%s1 + $0xe8] sm:$0xff]
    %v103 = vld [vmem:[%s1 + $0xf0] sm:$0xff]
    %v104 = vld [vmem:[%s1 + $0xf8] sm:$0xff]
    %v105 = vld [vmem:[%s1 + $0x100] sm:$0xff]
    %v106 = vld [vmem:[%s1 + $0x108] sm:$0xff]
    %v107 = vld [vmem:[%s1 + $0x110] sm:$0xff]
    %v108 = vld [vmem:[%s1 + $0x118] sm:$0xff]
    %v109 = vld [vmem:[%s1 + $0x120] sm:$0xff]
    %v110 = vld [vmem:[%s1 + $0x128] sm:$0xff]
    %v111 = vld [vmem:[%s1 + $0x130] sm:$0xff]
    %v112 = vld [vmem:[%s1 + $0x138] sm:$0xff]
    %v113 = vld [vmem:[%s1 + $0x140] sm:$0xff]
    %v114 = vld [vmem:[%s1 + $0x148] sm:$0xff]
    %v115 = vld [vmem:[%s1 + $0x150] sm:$0xff]
    %v116 = vld [vmem:[%s1 + $0x158] sm:$0xff]
    %v117 = vld [vmem:[%s1 + $0x160] sm:$0xff]
    %v118 = vld [vmem:[%s1 + $0x168] sm:$0xff]
    %v119 = vld [vmem:[%s1 + $0x170] sm:$0xff]
    %v120 = vld [vmem:[%s1 + $0x178] sm:$0xff]
    %v121 = vld [vmem:[%s1 + $0x180] sm:$0xff]
    %v122 = vld [vmem:[%s1 + $0x188] sm:$0xff]
    %v123 = vld [vmem:[%s1 + $0x190] sm:$0xff]
    %v124 = vld [vmem:[%s1 + $0x198] sm:$0xff]
    %v125 = vld [vmem:[%s1 + $0x1a0] sm:$0xff]
    %v126 = vld [vmem:[%s1 + $0x1a8] sm:$0xff]
    %v127 = vld [vmem:[%s1 + $0x1b0] sm:$0xff]
    %v128 = vld [vmem:[%s1 + $0x1b8] sm:$0xff]
    %v129 = vld [vmem:[%s1 + $0x1c0] sm:$0xff]
    %v130 = vld [vmem:[%s1 + $0x1c8] sm:$0xff]
    %v131 = vld [vmem:[%s1 + $0x1d0] sm:$0xff]
    %v132 = vld [vmem:[%s1 + $0x1d8] sm:$0xff]
    %v133 = vld [vmem:[%s1 + $0x1e0] sm:$0xff]
    %v134 = vld [vmem:[%s1 + $0x1e8] sm:$0xff]
    %v135 = vld [vmem:[%s1 + $0x1f0] sm:$0xff]
    %v136 = vld [vmem:[%s1 + $0x1f8] sm:$0xff]
    %137 = vmatpush.msra.mxu0 %v103
    %138 = vmatpush.msra.mxu0 %v101
    %139 = vmatpush.msra.mxu0 %v99
    %140 = vmatpush.msra.mxu0 %v97
    %141 = vmatpush.msra.mxu0 %v95
    %142 = vmatpush.msra.mxu0 %v93
    %143 = vmatpush.msra.mxu0 %v91
    %144 = vmatpush.msra.mxu0 %v89
    %145 = vmatpush.msra.mxu0 %v87
    %146 = vmatpush.msra.mxu0 %v85
    %147 = vmatpush.msra.mxu0 %v83
    %148 = vmatpush.msra.mxu0 %v81
    %149 = vmatpush.msra.mxu0 %v79
    %150 = vmatpush.msra.mxu0 %v77
    %151 = vmatpush.msra.mxu0 %v75
    %152 = vmatpush.msra.mxu0 %v73
    %153 = vmatmul.f32.gmra.mxu0 %v72
    %v154 = vpop.f32.mrf.mxu0
    %v155 = vadd.f32 0.0, %v154
    %156 = vdwg.mxu0
    %157 = vmatpush.msra.mxu0 %v104
    %158 = vmatpush.msra.mxu0 %v102
    %159 = vmatpush.msra.mxu0 %v100
    %160 = vmatpush.msra.mxu0 %v98
    %161 = vmatpush.msra.mxu0 %v96
    %162 = vmatpush.msra.mxu0 %v94
    %163 = vmatpush.msra.mxu0 %v92
    %164 = vmatpush.msra.mxu0 %v90
    %165 = vmatpush.msra.mxu0 %v88
    %166 = vmatpush.msra.mxu0 %v86
    %167 = vmatpush.msra.mxu0 %v84
    %168 = vmatpush.msra.mxu0 %v82
    %169 = vmatpush.msra.mxu0 %v80
    %170 = vmatpush.msra.mxu0 %v78
    %171 = vmatpush.msra.mxu0 %v76
    %172 = vmatpush.msra.mxu0 %v74
    %173 = vmatmul.f32.gmra.mxu0 %v72
    %v174 = vpop.f32.mrf.mxu0
    %v175 = vadd.f32 0.0, %v174
    %176 = vdwg.mxu0
    %177 = vmatpush.msra.mxu0 %v135
    %178 = vmatpush.msra.mxu0 %v133
    %179 = vmatpush.msra.mxu0 %v131
    %180 = vmatpush.msra.mxu0 %v129
    %181 = vmatpush.msra.mxu0 %v127
    %182 = vmatpush.msra.mxu0 %v125
    %183 = vmatpush.msra.mxu0 %v123
    %184 = vmatpush.msra.mxu0 %v121
    %185 = vmatpush.msra.mxu0 %v119
    %186 = vmatpush.msra.mxu0 %v117
    %187 = vmatpush.msra.mxu0 %v115
    %188 = vmatpush.msra.mxu0 %v113
    %189 = vmatpush.msra.mxu0 %v111
    %190 = vmatpush.msra.mxu0 %v109
    %191 = vmatpush.msra.mxu0 %v107
    %192 = vmatpush.msra.mxu0 %v105
    %193 = vmatmul.f32.gmra.mxu0 %v72
    %v194 = vpop.f32.mrf.mxu0
    %v195 = vadd.f32 0.0, %v194
    %196 = vdwg.mxu0
    %197 = vmatpush.msra.mxu0 %v136
    %198 = vmatpush.msra.mxu0 %v134
    %199 = vmatpush.msra.mxu0 %v132
    %200 = vmatpush.msra.mxu0 %v130
    %201 = vmatpush.msra.mxu0 %v128
    %202 = vmatpush.msra.mxu0 %v126
    %203 = vmatpush.msra.mxu0 %v124
    %204 = vmatpush.msra.mxu0 %v122
    %205 = vmatpush.msra.mxu0 %v120
    %206 = vmatpush.msra.mxu0 %v118
    %207 = vmatpush.msra.mxu0 %v116
    %208 = vmatpush.msra.mxu0 %v114
    %209 = vmatpush.msra.mxu0 %v112
    %210 = vmatpush.msra.mxu0 %v110
    %211 = vmatpush.msra.mxu0 %v108
    %212 = vmatpush.msra.mxu0 %v106
    %213 = vmatmul.f32.gmra.mxu0 %v72
    %v214 = vpop.f32.mrf.mxu0
    %v215 = vadd.f32 0.0, %v214
    %216 = vdwg.mxu0
    %v219 = vrot.slane %v195, 6
    %v220 = vrot.slane %v215, 6
    %v223 = vadd.f32 %v155, %v219
    %v224 = vadd.f32 %v175, %v220
    %v225 = vrot.slane %v195, 4
    %v226 = vrot.slane %v215, 4
    %v229 = vadd.f32 %v155, %v225
    %v230 = vadd.f32 %v175, %v226
    %v233 = vrot.slane %v223, 4
    %v234 = vrot.slane %v224, 4
    %v239 = vrot.slane %v229, 6
    %v240 = vrot.slane %v230, 6
    %v243 = vsel %vm67, %v233, %v239
    %v244 = vsel %vm67, %v234, %v240
    %v245 = vsel %vm69, %v243, %v233
    %v246 = vsel %vm69, %v244, %v234
    %v247 = vld [vmem:[%s2] sm:$0x3]
    %v249 = vperm.slane %v247, 0
    %v250 = vperm.slane %v247, 1
    %v253 = vadd.f32 %v245, %v249
    %v254 = vadd.f32 %v246, %v250
    %v255 = vmax.f32 %v253, 0.0
    %v256 = vmax.f32 %v254, 0.0
    %v257 = vld [vmem:[#allocation3] sm:$0xff]
    %v258 = vld [vmem:[#allocation3 + $0x8] sm:$0xff]
    %v259 = vld [vmem:[#allocation3 + $0x10] sm:$0xff]
    %v260 = vld [vmem:[#allocation3 + $0x18] sm:$0xff]
    %v261 = vld [vmem:[#allocation3 + $0x20] sm:$0xff]
    %v262 = vld [vmem:[#allocation3 + $0x28] sm:$0xff]
    %v263 = vld [vmem:[#allocation3 + $0x30] sm:$0xff]
    %v264 = vld [vmem:[#allocation3 + $0x38] sm:$0xff]
    %v265 = vld [vmem:[#allocation3 + $0x40] sm:$0xff]
    %v266 = vld [vmem:[#allocation3 + $0x48] sm:$0xff]
    %v267 = vld [vmem:[#allocation3 + $0x50] sm:$0xff]
    %v268 = vld [vmem:[#allocation3 + $0x58] sm:$0xff]
    %v269 = vld [vmem:[#allocation3 + $0x60] sm:$0xff]
    %v270 = vld [vmem:[#allocation3 + $0x68] sm:$0xff]
    %v271 = vld [vmem:[#allocation3 + $0x70] sm:$0xff]
    %v272 = vld [vmem:[#allocation3 + $0x78] sm:$0xff]
    %v273 = vld [vmem:[#allocation3 + $0x80] sm:$0xff]
    %v274 = vld [vmem:[#allocation3 + $0x88] sm:$0xff]
    %v275 = vld [vmem:[#allocation3 + $0x90] sm:$0xff]
    %v276 = vld [vmem:[#allocation3 + $0x98] sm:$0xff]
    %v277 = vld [vmem:[#allocation3 + $0xa0] sm:$0xff]
    %v278 = vld [vmem:[#allocation3 + $0xa8] sm:$0xff]
    %v279 = vld [vmem:[#allocation3 + $0xb0] sm:$0xff]
    %v280 = vld [vmem:[#allocation3 + $0xb8] sm:$0xff]
    %v281 = vld [vmem:[#allocation3 + $0xc0] sm:$0xff]
    %v282 = vld [vmem:[#allocation3 + $0xc8] sm:$0xff]
    %v283 = vld [vmem:[#allocation3 + $0xd0] sm:$0xff]
    %v284 = vld [vmem:[#allocation3 + $0xd8] sm:$0xff]
    %v285 = vld [vmem:[#allocation3 + $0xe0] sm:$0xff]
    %v286 = vld [vmem:[#allocation3 + $0xe8] sm:$0xff]
    %v287 = vld [vmem:[#allocation3 + $0xf0] sm:$0xff]
    %v288 = vld [vmem:[#allocation3 + $0xf8] sm:$0xff]
    %v289 = vld [vmem:[#allocation3 + $0x100] sm:$0xff]
    %v290 = vld [vmem:[#allocation3 + $0x108] sm:$0xff]
    %v291 = vld [vmem:[#allocation3 + $0x110] sm:$0xff]
    %v292 = vld [vmem:[#allocation3 + $0x118] sm:$0xff]
    %v293 = vld [vmem:[#allocation3 + $0x120] sm:$0xff]
    %v294 = vld [vmem:[#allocation3 + $0x128] sm:$0xff]
    %v295 = vld [vmem:[#allocation3 + $0x130] sm:$0xff]
    %v296 = vld [vmem:[#allocation3 + $0x138] sm:$0xff]
    %v297 = vld [vmem:[#allocation3 + $0x140] sm:$0xff]
    %v298 = vld [vmem:[#allocation3 + $0x148] sm:$0xff]
    %v299 = vld [vmem:[#allocation3 + $0x150] sm:$0xff]
    %v300 = vld [vmem:[#allocation3 + $0x158] sm:$0xff]
    %v301 = vld [vmem:[#allocation3 + $0x160] sm:$0xff]
    %v302 = vld [vmem:[#allocation3 + $0x168] sm:$0xff]
    %v303 = vld [vmem:[#allocation3 + $0x170] sm:$0xff]
    %v304 = vld [vmem:[#allocation3 + $0x178] sm:$0xff]
    %v305 = vld [vmem:[#allocation3 + $0x180] sm:$0xff]
    %v306 = vld [vmem:[#allocation3 + $0x188] sm:$0xff]
    %v307 = vld [vmem:[#allocation3 + $0x190] sm:$0xff]
    %v308 = vld [vmem:[#allocation3 + $0x198] sm:$0xff]
    %v309 = vld [vmem:[#allocation3 + $0x1a0] sm:$0xff]
    %v310 = vld [vmem:[#allocation3 + $0x1a8] sm:$0xff]
    %v311 = vld [vmem:[#allocation3 + $0x1b0] sm:$0xff]
    %v312 = vld [vmem:[#allocation3 + $0x1b8] sm:$0xff]
    %v313 = vld [vmem:[#allocation3 + $0x1c0] sm:$0xff]
    %v314 = vld [vmem:[#allocation3 + $0x1c8] sm:$0xff]
    %v315 = vld [vmem:[#allocation3 + $0x1d0] sm:$0xff]
    %v316 = vld [vmem:[#allocation3 + $0x1d8] sm:$0xff]
    %v317 = vld [vmem:[#allocation3 + $0x1e0] sm:$0xff]
    %v318 = vld [vmem:[#allocation3 + $0x1e8] sm:$0xff]
    %v319 = vld [vmem:[#allocation3 + $0x1f0] sm:$0xff]
    %v320 = vld [vmem:[#allocation3 + $0x1f8] sm:$0xff]
    %v321 = vld [vmem:[%s4] sm:$0x3]
    %v323 = vperm.slane %v321, 0
    %v324 = vperm.slane %v321, 1
    %327 = vmatpush.msra.mxu0 %v287
    %328 = vmatpush.msra.mxu0 %v285
    %329 = vmatpush.msra.mxu0 %v283
    %330 = vmatpush.msra.mxu0 %v281
    %331 = vmatpush.msra.mxu0 %v279
    %332 = vmatpush.msra.mxu0 %v277
    %333 = vmatpush.msra.mxu0 %v275
    %334 = vmatpush.msra.mxu0 %v273
    %335 = vmatpush.msra.mxu0 %v271
    %336 = vmatpush.msra.mxu0 %v269
    %337 = vmatpush.msra.mxu0 %v267
    %338 = vmatpush.msra.mxu0 %v265
    %339 = vmatpush.msra.mxu0 %v263
    %340 = vmatpush.msra.mxu0 %v261
    %341 = vmatpush.msra.mxu0 %v259
    %342 = vmatpush.msra.mxu0 %v257
    %343 = vmatmul.f32.gmra.mxu0 %v255
    %v344 = vpop.f32.mrf.mxu0
    %v345 = vadd.f32 %v323, %v344
    %346 = vdwg.mxu0
    %347 = vmatpush.msra.mxu0 %v319
    %348 = vmatpush.msra.mxu0 %v317
    %349 = vmatpush.msra.mxu0 %v315
    %350 = vmatpush.msra.mxu0 %v313
    %351 = vmatpush.msra.mxu0 %v311
    %352 = vmatpush.msra.mxu0 %v309
    %353 = vmatpush.msra.mxu0 %v307
    %354 = vmatpush.msra.mxu0 %v305
    %355 = vmatpush.msra.mxu0 %v303
    %356 = vmatpush.msra.mxu0 %v301
    %357 = vmatpush.msra.mxu0 %v299
    %358 = vmatpush.msra.mxu0 %v297
    %359 = vmatpush.msra.mxu0 %v295
    %360 = vmatpush.msra.mxu0 %v293
    %361 = vmatpush.msra.mxu0 %v291
    %362 = vmatpush.msra.mxu0 %v289
    %363 = vmatmul.f32.gmra.mxu0 %v256
    %v364 = vpop.f32.mrf.mxu0
    %v365 = vadd.f32 %v345, %v364
    %366 = vdwg.mxu0
    %367 = vmatpush.msra.mxu0 %v288
    %368 = vmatpush.msra.mxu0 %v286
    %369 = vmatpush.msra.mxu0 %v284
    %370 = vmatpush.msra.mxu0 %v282
    %371 = vmatpush.msra.mxu0 %v280
    %372 = vmatpush.msra.mxu0 %v278
    %373 = vmatpush.msra.mxu0 %v276
    %374 = vmatpush.msra.mxu0 %v274
    %375 = vmatpush.msra.mxu0 %v272
    %376 = vmatpush.msra.mxu0 %v270
    %377 = vmatpush.msra.mxu0 %v268
    %378 = vmatpush.msra.mxu0 %v266
    %379 = vmatpush.msra.mxu0 %v264
    %380 = vmatpush.msra.mxu0 %v262
    %381 = vmatpush.msra.mxu0 %v260
    %382 = vmatpush.msra.mxu0 %v258
    %383 = vmatmul.f32.gmra.mxu0 %v255
    %v384 = vpop.f32.mrf.mxu0
    %v385 = vadd.f32 %v324, %v384
    %386 = vdwg.mxu0
    %387 = vmatpush.msra.mxu0 %v320
    %388 = vmatpush.msra.mxu0 %v318
    %389 = vmatpush.msra.mxu0 %v316
    %390 = vmatpush.msra.mxu0 %v314
    %391 = vmatpush.msra.mxu0 %v312
    %392 = vmatpush.msra.mxu0 %v310
    %393 = vmatpush.msra.mxu0 %v308
    %394 = vmatpush.msra.mxu0 %v306
    %395 = vmatpush.msra.mxu0 %v304
    %396 = vmatpush.msra.mxu0 %v302
    %397 = vmatpush.msra.mxu0 %v300
    %398 = vmatpush.msra.mxu0 %v298
    %399 = vmatpush.msra.mxu0 %v296
    %400 = vmatpush.msra.mxu0 %v294
    %401 = vmatpush.msra.mxu0 %v292
    %402 = vmatpush.msra.mxu0 %v290
    %403 = vmatmul.f32.gmra.mxu0 %v256
    %v404 = vpop.f32.mrf.mxu0
    %v405 = vadd.f32 %v385, %v404
    %406 = vdwg.mxu0
    %v407 = vmax.f32 %v365, 0.0
    %v408 = vmax.f32 %v405, 0.0
    %v409 = vld [vmem:[%s5] sm:$0xff]
    %v410 = vld [vmem:[%s5 + $0x8] sm:$0xff]
    %v411 = vld [vmem:[%s5 + $0x10] sm:$0xff]
    %v412 = vld [vmem:[%s5 + $0x18] sm:$0xff]
    %v413 = vld [vmem:[%s5 + $0x20] sm:$0xff]
    %v414 = vld [vmem:[%s5 + $0x28] sm:$0xff]
    %v415 = vld [vmem:[%s5 + $0x30] sm:$0xff]
    %v416 = vld [vmem:[%s5 + $0x38] sm:$0xff]
    %v417 = vld [vmem:[%s5 + $0x40] sm:$0xff]
    %v418 = vld [vmem:[%s5 + $0x48] sm:$0xff]
    %v419 = vld [vmem:[%s5 + $0x50] sm:$0xff]
    %v420 = vld [vmem:[%s5 + $0x58] sm:$0xff]
    %v421 = vld [vmem:[%s5 + $0x60] sm:$0xff]
    %v422 = vld [vmem:[%s5 + $0x68] sm:$0xff]
    %v423 = vld [vmem:[%s5 + $0x70] sm:$0xff]
    %v424 = vld [vmem:[%s5 + $0x78] sm:$0xff]
    %v425 = vld [vmem:[%s5 + $0x80] sm:$0xff]
    %v426 = vld [vmem:[%s5 + $0x88] sm:$0xff]
    %v427 = vld [vmem:[%s5 + $0x90] sm:$0xff]
    %v428 = vld [vmem:[%s5 + $0x98] sm:$0xff]
    %v429 = vld [vmem:[%s5 + $0xa0] sm:$0xff]
    %v430 = vld [vmem:[%s5 + $0xa8] sm:$0xff]
    %v431 = vld [vmem:[%s5 + $0xb0] sm:$0xff]
    %v432 = vld [vmem:[%s5 + $0xb8] sm:$0xff]
    %v433 = vld [vmem:[%s5 + $0xc0] sm:$0xff]
    %v434 = vld [vmem:[%s5 + $0xc8] sm:$0xff]
    %v435 = vld [vmem:[%s5 + $0xd0] sm:$0xff]
    %v436 = vld [vmem:[%s5 + $0xd8] sm:$0xff]
    %v437 = vld [vmem:[%s5 + $0xe0] sm:$0xff]
    %v438 = vld [vmem:[%s5 + $0xe8] sm:$0xff]
    %v439 = vld [vmem:[%s5 + $0xf0] sm:$0xff]
    %v440 = vld [vmem:[%s5 + $0xf8] sm:$0xff]
    %v441 = vld [vmem:[#allocation2] sm:$0x1]
    %v443 = vperm.slane %v441, 0
    %445 = vmatpush.msra.mxu0 %v424
    %446 = vmatpush.msra.mxu0 %v423
    %447 = vmatpush.msra.mxu0 %v422
    %448 = vmatpush.msra.mxu0 %v421
    %449 = vmatpush.msra.mxu0 %v420
    %450 = vmatpush.msra.mxu0 %v419
    %451 = vmatpush.msra.mxu0 %v418
    %452 = vmatpush.msra.mxu0 %v417
    %453 = vmatpush.msra.mxu0 %v416
    %454 = vmatpush.msra.mxu0 %v415
    %455 = vmatpush.msra.mxu0 %v414
    %456 = vmatpush.msra.mxu0 %v413
    %457 = vmatpush.msra.mxu0 %v412
    %458 = vmatpush.msra.mxu0 %v411
    %459 = vmatpush.msra.mxu0 %v410
    %460 = vmatpush.msra.mxu0 %v409
    %461 = vmatmul.f32.gmra.mxu0 %v407
    %v462 = vpop.f32.mrf.mxu0
    %v463 = vadd.f32 %v443, %v462
    %464 = vdwg.mxu0
    %465 = vmatpush.msra.mxu0 %v440
    %466 = vmatpush.msra.mxu0 %v439
    %467 = vmatpush.msra.mxu0 %v438
    %468 = vmatpush.msra.mxu0 %v437
    %469 = vmatpush.msra.mxu0 %v436
    %470 = vmatpush.msra.mxu0 %v435
    %471 = vmatpush.msra.mxu0 %v434
    %472 = vmatpush.msra.mxu0 %v433
    %473 = vmatpush.msra.mxu0 %v432
    %474 = vmatpush.msra.mxu0 %v431
    %475 = vmatpush.msra.mxu0 %v430
    %476 = vmatpush.msra.mxu0 %v429
    %477 = vmatpush.msra.mxu0 %v428
    %478 = vmatpush.msra.mxu0 %v427
    %479 = vmatpush.msra.mxu0 %v426
    %480 = vmatpush.msra.mxu0 %v425
    %481 = vmatmul.f32.gmra.mxu0 %v408
    %v482 = vpop.f32.mrf.mxu0
    %v483 = vadd.f32 %v463, %v482
    %484 = vdwg.mxu0
    %v485 = vxor.u32 %v483, 2147483648
    %v486 = vmul.f32 %v485, 1.442695
    %v487 = vpow.pop %v486
    %v488 = vadd.f32 %v487, 1.0
    %v489 = vrcp.pop %v488
    %v490 = vmul.f32 %v488, %v489
    %v491 = vsub.f32 1.0, %v490
    %v492 = vmul.f32 %v489, %v491
    %v493 = vadd.f32 %v489, %v492
    %vm494 = vweird.f32 %v488
    %vm495 = vweird.f32 %v489
    %vm496 = vmor %vm494, %vm495
    %v497 = vsel %vm496, %v489, %v493
    %v498 = vand.u32 2147483647, %v488
    %vm499 = vcmp.eq.f32.partialorder %v498, 8.507059e+37
    %v500 = vand.u32 %v488, 2147483648
    %v501 = vor.u32 1.1754944e-38, %v500
    %v502 = vsel %vm499, %v501, %v497
    %v503 = vmul.f32 1.0, %v502
    %vm504 = vcmask 5120
    %505 = vst.msk [vmem:[%s7] sm:$0x3f] %vm504, %v503
    // Predicated region
    $region34: #{net_forward.3} parent=1 // pred_check
      _
    $region35: #{net_forward.3} parent=1 // pred_check_branch
      %507 = sbr.rel (0) target = $region37
    $region36: #{net_forward.3} parent=1 // pred_region
      _
    $region37: #{net_forward.3} parent=1 // pred_fallthru
      _
    // Predicated region
    $region38: #{net_forward.3} parent=1 // pred_check
      _
    $region39: #{net_forward.3} parent=1 // pred_check_branch
      %509 = sbr.rel (0) target = $region41
    $region40: #{net_forward.3} parent=1 // pred_region
      _
    $region41: #{net_forward.3} parent=1 // pred_fallthru
      _
    %510 = vsyncpa [#allocation4], 1

</llo_original>
